<compile_context>
chip_gen: v5e
topology: v5e:2x2
jax: 0.10.0
libtpu: 0.0.40
codegen_flags: <defaults>
</compile_context>

<pallas_src>
import functools
import math

import jax
import jax.numpy as jnp
from jax.experimental import pallas as pl
from jax.experimental.pallas import tpu as pltpu

NEG_MASK = -1e30  # finite "minus infinity" for key padding (avoids NaN)


# ----------------------------------------------------------------------------
# Fused Pallas kernel: one batch element per grid step, both cross attentions
# ----------------------------------------------------------------------------

def _cross_attn_layer_kernel(
        xa_ref, xb_ref, mask_a_ref, mask_b_ref,
        w_proj_ref, b_proj_ref, w_out_ref, b_out_ref,
        out_a_ref, out_b_ref,
        ctx_a_scr, ctx_b_scr,
        *, n_head, d_head):
    bi = pl.program_id(0)

    xa = xa_ref[0]                        # (Sa, D) bf16
    xb = xb_ref[0]                        # (Sb, D) bf16

    # Additive key-padding masks for this batch element.  Full (B, Sk) mask
    # arrays are VMEM-resident; slicing here avoids per-step sub-tile DMAs.
    m_a = mask_a_ref[pl.ds(bi, 1), :]     # (1, Sa): keys = x_a (used by attn_b)
    m_b = mask_b_ref[pl.ds(bi, 1), :]     # (1, Sb): keys = x_b (used by attn_a)

    def proj(x, i):
        # (S, D) bf16 @ (D, D) bf16 -> (S, D) f32 (+bias); Q scale pre-folded.
        return (jnp.dot(x, w_proj_ref[i], preferred_element_type=jnp.float32)
                + b_proj_ref[i])

    # stream-A input feeds Q of attn_a and K/V of attn_b; stream-B vice versa.
    q_attn_a = proj(xa, 0)                # (Sa, D)
    k_attn_b = proj(xa, 1)                # (Sa, D)
    v_attn_b = proj(xa, 2)                # (Sa, D)
    q_attn_b = proj(xb, 3)                # (Sb, D)
    k_attn_a = proj(xb, 4)                # (Sb, D)
    v_attn_a = proj(xb, 5)                # (Sb, D)

    def mha(q, k, v, m_add, ctx_scr, o_ref, idx):
        # Per-head attention; context is written head-by-head into the VMEM
        # scratch slab (bounded live ranges, no concatenate), then a single
        # fused lane-wide output projection produces the result.
        for h in range(n_head):                              # small static unroll
            lo, hi = h * d_head, (h + 1) * d_head
            qh = q[:, lo:hi].astype(jnp.bfloat16)            # (Sq, Dh)
            kh = k[:, lo:hi].astype(jnp.bfloat16)            # (Sk, Dh)
            vh = v[:, lo:hi].astype(jnp.bfloat16)            # (Sk, Dh)
            # scores = qh @ kh^T (contract on Dh, no explicit transpose)
            s = jax.lax.dot_general(
                qh, kh, dimension_numbers=(((1,), (1,)), ((), ())),
                preferred_element_type=jnp.float32)          # (Sq, Sk) f32
            s = s + m_add
            s = s - jnp.max(s, axis=-1, keepdims=True)
            p = jnp.exp(s)
            p = p * pl.reciprocal(jnp.sum(p, axis=-1, keepdims=True),
                                  approx=True)
            ctx_scr[:, lo:hi] = jnp.dot(p.astype(jnp.bfloat16), vh,
                                        preferred_element_type=jnp.float32)
        out = (jnp.dot(ctx_scr[...].astype(jnp.bfloat16), w_out_ref[idx],
                       preferred_element_type=jnp.float32) + b_out_ref[idx])
        o_ref[0] = out

    # attn_a: query = x_a, key/value = x_b (so key-padding mask is m_b)
    mha(q_attn_a, k_attn_a, v_attn_a, m_b, ctx_a_scr, out_a_ref, 0)
    # attn_b: query = x_b, key/value = x_a
    mha(q_attn_b, k_attn_b, v_attn_b, m_a, ctx_b_scr, out_b_ref, 1)


# ----------------------------------------------------------------------------
# Module-level forward (mirrors CrossAttnLayer.forward)
# ----------------------------------------------------------------------------

def cross_attn_layer_forward(x_a, x_a_padding_mask, x_b, x_b_padding_mask,
                             params, n_head):
    """x_a: (Sa, B, D), x_b: (Sb, B, D); padding masks: (S, B) bool (True=pad).
    Returns (attn_a: (Sa, B, D), attn_b: (Sb, B, D))."""
    sa, bsz, d = x_a.shape
    sb = x_b.shape[0]
    d_head = d // n_head

    # Batch-major + bf16 (single fused XLA transpose/cast per input): halves
    # the kernel's input DMA and removes in-kernel f32->bf16 casts.
    xa_bm = jnp.transpose(x_a, (1, 0, 2)).astype(jnp.bfloat16)   # (B, Sa, D)
    xb_bm = jnp.transpose(x_b, (1, 0, 2)).astype(jnp.bfloat16)   # (B, Sb, D)

    # Additive key-padding masks (finite negative -> no NaN on all-pad rows).
    mask_a_add = jnp.where(x_a_padding_mask.T, NEG_MASK, 0.0
                           ).astype(jnp.float32)                 # (B, Sa)
    mask_b_add = jnp.where(x_b_padding_mask.T, NEG_MASK, 0.0
                           ).astype(jnp.float32)                 # (B, Sb)

    kern = functools.partial(_cross_attn_layer_kernel,
                             n_head=n_head, d_head=d_head)

    out_a, out_b = pl.pallas_call(
        kern,
        out_shape=(jax.ShapeDtypeStruct((bsz, sa, d), jnp.float32),
                   jax.ShapeDtypeStruct((bsz, sb, d), jnp.float32)),
        grid=(bsz,),
        in_specs=[
            pl.BlockSpec((1, sa, d), lambda i: (i, 0, 0)),    # x_a, this batch
            pl.BlockSpec((1, sb, d), lambda i: (i, 0, 0)),    # x_b, this batch
            pl.BlockSpec((bsz, sa), lambda i: (0, 0)),        # mask_a (resident)
            pl.BlockSpec((bsz, sb), lambda i: (0, 0)),        # mask_b (resident)
            pl.BlockSpec((6, d, d), lambda i: (0, 0, 0)),     # w_proj_t (resident)
            pl.BlockSpec((6, 1, d), lambda i: (0, 0, 0)),     # b_proj   (resident)
            pl.BlockSpec((2, d, d), lambda i: (0, 0, 0)),     # w_out_t  (resident)
            pl.BlockSpec((2, 1, d), lambda i: (0, 0, 0)),     # b_out    (resident)
        ],
        out_specs=(pl.BlockSpec((1, sa, d), lambda i: (i, 0, 0)),
                   pl.BlockSpec((1, sb, d), lambda i: (i, 0, 0))),
        scratch_shapes=[pltpu.VMEM((sa, d), jnp.float32),     # ctx slab attn_a
                        pltpu.VMEM((sb, d), jnp.float32)],    # ctx slab attn_b
        compiler_params=pltpu.CompilerParams(
            dimension_semantics=("parallel",)),
    )(xa_bm, xb_bm, mask_a_add, mask_b_add,
      params["w_proj_t"], params["b_proj"],
      params["w_out_t"], params["b_out"])

    return (jnp.transpose(out_a, (1, 0, 2)),                  # back to (Sq, B, D)
            jnp.transpose(out_b, (1, 0, 2)))


# ----------------------------------------------------------------------------
# Parameter init (torch conventions) + one-time packing (outside jit)
# ----------------------------------------------------------------------------

def _xavier_uniform(key, shape):
    fan_out, fan_in = shape
    limit = math.sqrt(6.0 / (fan_in + fan_out))
    return jax.random.uniform(key, shape, jnp.float32, -limit, limit)


def init_mha_params(key, d):
    """Fairseq-style MultiheadAttention params in torch (Dout, Din) layout."""
    ks = jax.random.split(key, 4)
    z = jnp.zeros((d,), jnp.float32)
    return dict(
        wq=_xavier_uniform(ks[0], (d, d)), bq=z,
        wk=_xavier_uniform(ks[1], (d, d)), bk=z,
        wv=_xavier_uniform(ks[2], (d, d)), bv=z,
        wo=_xavier_uniform(ks[3], (d, d)), bo=z,
    )


def prepare_cross_attn_params(p_a, p_b, d, n_head):
    """Stack + transpose weights ONCE (bf16 for MXU), fold softmax scale into Q.

    p_a: cross_attn_a (query = x_a, key/value = x_b)
    p_b: cross_attn_b (query = x_b, key/value = x_a)
    Stacking order of w_proj_t / b_proj (all applied to the *input* stream):
      0: Q of attn_a (x_a)   1: K of attn_b (x_a)   2: V of attn_b (x_a)
      3: Q of attn_b (x_b)   4: K of attn_a (x_b)   5: V of attn_a (x_b)
    """
    scale = (d // n_head) ** -0.5
    w_proj_t = jnp.stack([
        (p_a["wq"] * scale).T, p_b["wk"].T, p_b["wv"].T,
        (p_b["wq"] * scale).T, p_a["wk"].T, p_a["wv"].T,
    ]).astype(jnp.bfloat16)                                        # (6, D, D)
    b_proj = jnp.stack([
        p_a["bq"] * scale, p_b["bk"], p_b["bv"],
        p_b["bq"] * scale, p_a["bk"], p_a["bv"],
    ]).reshape(6, 1, d).astype(jnp.float32)
    w_out_t = jnp.stack([p_a["wo"].T, p_b["wo"].T]).astype(jnp.bfloat16)
    b_out = jnp.stack([p_a["bo"], p_b["bo"]]).reshape(2, 1, d).astype(jnp.float32)
    return dict(w_proj_t=w_proj_t, b_proj=b_proj, w_out_t=w_out_t, b_out=b_out)


# ----------------------------------------------------------------------------
# Pure-JAX f32 reference (fairseq MHA, eval mode) for a correctness check
# ----------------------------------------------------------------------------

def _mha_reference(query, key_value, key_padding_mask, p, n_head):
    sq, bsz, d = query.shape
    sk = key_value.shape[0]
    dh = d // n_head
    scale = dh ** -0.5
    q = (jnp.einsum("sbd,ed->sbe", query, p["wq"]) + p["bq"]) * scale
    k = jnp.einsum("sbd,ed->sbe", key_value, p["wk"]) + p["bk"]
    v = jnp.einsum("sbd,ed->sbe", key_value, p["wv"]) + p["bv"]
    q = q.reshape(sq, bsz, n_head, dh).transpose(1, 2, 0, 3)       # (B,H,Sq,Dh)
    k = k.reshape(sk, bsz, n_head, dh).transpose(1, 2, 0, 3)
    v = v.reshape(sk, bsz, n_head, dh).transpose(1, 2, 0, 3)
    s = jnp.einsum("bhqd,bhkd->bhqk", q, k)
    s = s + jnp.where(key_padding_mask.T, NEG_MASK, 0.0)[:, None, None, :]
    a = jax.nn.softmax(s, axis=-1)
    ctx = jnp.einsum("bhqk,bhkd->bhqd", a, v)
    ctx = ctx.transpose(2, 0, 1, 3).reshape(sq, bsz, d)
    return jnp.einsum("sbd,ed->sbe", ctx, p["wo"]) + p["bo"]


# ----------------------------------------------------------------------------

if __name__ == "__main__":
    D_MODEL, N_HEAD = 32, 4
    BSZ, SEQ_A, SEQ_B = 2, 8, 10

    key = jax.random.PRNGKey(0)
    k_pa, k_pb, k_a, k_b = jax.random.split(key, 4)
    raw_a = init_mha_params(k_pa, D_MODEL)
    raw_b = init_mha_params(k_pb, D_MODEL)
    params = prepare_cross_attn_params(raw_a, raw_b, D_MODEL, N_HEAD)

    x_a = jax.random.normal(k_a, (SEQ_A, BSZ, D_MODEL), jnp.float32)
    x_b = jax.random.normal(k_b, (SEQ_B, BSZ, D_MODEL), jnp.float32)

    # padding masks per module signature: (seq_len, bsz), True = padded
    lens_a = jnp.array([SEQ_A, 5])
    lens_b = jnp.array([SEQ_B, 7])
    mask_a = jnp.arange(SEQ_A)[:, None] >= lens_a[None, :]        # (Sa, B) bool
    mask_b = jnp.arange(SEQ_B)[:, None] >= lens_b[None, :]        # (Sb, B) bool

    fwd = jax.jit(
        lambda xa, ma, xb, mb, p: cross_attn_layer_forward(
            xa, ma, xb, mb, p, N_HEAD))

    out_a, out_b = fwd(x_a, mask_a, x_b, mask_b, params)
    jax.block_until_ready((out_a, out_b))

    assert out_a.shape == (SEQ_A, BSZ, D_MODEL)
    assert out_b.shape == (SEQ_B, BSZ, D_MODEL)
    assert bool(jnp.all(jnp.isfinite(out_a))) and bool(jnp.all(jnp.isfinite(out_b)))

    # loose tolerance: kernel runs q/k/v/p/ctx matmuls in bf16 (f32 accum)
    # and uses an approximate reciprocal in the softmax normalization.
    ref_a = _mha_reference(x_a, x_b, mask_b, raw_a, N_HEAD)
    ref_b = _mha_reference(x_b, x_a, mask_a, raw_b, N_HEAD)
    assert float(jnp.max(jnp.abs(out_a - ref_a))) < 0.1
    assert float(jnp.max(jnp.abs(out_b - ref_b))) < 0.1

    print("KERNEL_OK")
</pallas_src>

<mosaic_0001>
module attributes {stable_mosaic.version = 11 : i64} {
  func.func @_cross_attn_layer_kernel(%arg0: i32, %arg1: memref<1x8x32xbf16, #tpu.memory_space<vmem>>, %arg2: memref<1x10x32xbf16, #tpu.memory_space<vmem>>, %arg3: memref<2x8xf32, #tpu.memory_space<vmem>>, %arg4: memref<2x10xf32, #tpu.memory_space<vmem>>, %arg5: memref<6x32x32xbf16, #tpu.memory_space<vmem>>, %arg6: memref<6x1x32xf32, #tpu.memory_space<vmem>>, %arg7: memref<2x32x32xbf16, #tpu.memory_space<vmem>>, %arg8: memref<2x1x32xf32, #tpu.memory_space<vmem>>, %arg9: memref<1x8x32xf32, #tpu.memory_space<vmem>>, %arg10: memref<1x10x32xf32, #tpu.memory_space<vmem>>, %arg11: memref<8x32xf32, #tpu.memory_space<vmem>>, %arg12: memref<10x32xf32, #tpu.memory_space<vmem>>) attributes {dimension_semantics = [#tpu.dimension_semantics<parallel>], iteration_bounds = array<i64: 2>, scalar_prefetch = 0 : i64, scratch_operands = 2 : i64, tpu.core_type = #tpu.core_type<tc>, window_params = [{transform_indices = @transform_0, window_bounds = array<i64: 1, 8, 32>}, {transform_indices = @transform_1, window_bounds = array<i64: 1, 10, 32>}, {pipeline_mode = #tpu.pipeline_mode<synchronous>, transform_indices = @transform_2, window_bounds = array<i64: 2, 8>}, {pipeline_mode = #tpu.pipeline_mode<synchronous>, transform_indices = @transform_3, window_bounds = array<i64: 2, 10>}, {pipeline_mode = #tpu.pipeline_mode<synchronous>, transform_indices = @transform_4, window_bounds = array<i64: 6, 32, 32>}, {pipeline_mode = #tpu.pipeline_mode<synchronous>, transform_indices = @transform_5, window_bounds = array<i64: 6, 1, 32>}, {pipeline_mode = #tpu.pipeline_mode<synchronous>, transform_indices = @transform_6, window_bounds = array<i64: 2, 32, 32>}, {pipeline_mode = #tpu.pipeline_mode<synchronous>, transform_indices = @transform_7, window_bounds = array<i64: 2, 1, 32>}, {transform_indices = @transform_8, window_bounds = array<i64: 1, 8, 32>}, {transform_indices = @transform_9, window_bounds = array<i64: 1, 10, 32>}]} {
    %c0 = arith.constant 0 : index
    %c0_0 = arith.constant 0 : index
    %c0_1 = arith.constant 0 : index
    %0 = vector.load %arg1[%c0, %c0_0, %c0_1] : memref<1x8x32xbf16, #tpu.memory_space<vmem>>, vector<1x8x32xbf16>
    %1 = vector.shape_cast %0 : vector<1x8x32xbf16> to vector<8x32xbf16>
    %c0_2 = arith.constant 0 : index
    %c0_3 = arith.constant 0 : index
    %c0_4 = arith.constant 0 : index
    %2 = vector.load %arg2[%c0_2, %c0_3, %c0_4] : memref<1x10x32xbf16, #tpu.memory_space<vmem>>, vector<1x10x32xbf16>
    %3 = vector.shape_cast %2 : vector<1x10x32xbf16> to vector<10x32xbf16>
    %4 = arith.index_cast %arg0 : i32 to index
    %c0_5 = arith.constant 0 : index
    %5 = vector.load %arg3[%4, %c0_5] : memref<2x8xf32, #tpu.memory_space<vmem>>, vector<1x8xf32>
    %6 = arith.index_cast %arg0 : i32 to index
    %c0_6 = arith.constant 0 : index
    %7 = vector.load %arg4[%6, %c0_6] : memref<2x10xf32, #tpu.memory_space<vmem>>, vector<1x10xf32>
    %c0_7 = arith.constant 0 : index
    %c0_8 = arith.constant 0 : index
    %c0_9 = arith.constant 0 : index
    %8 = vector.load %arg5[%c0_7, %c0_8, %c0_9] : memref<6x32x32xbf16, #tpu.memory_space<vmem>>, vector<1x32x32xbf16>
    %9 = vector.shape_cast %8 : vector<1x32x32xbf16> to vector<32x32xbf16>
    %cst = arith.constant dense<0.000000e+00> : vector<8x32xf32>
    %10 = tpu.matmul %1, %9, %cst {dimension_numbers = #tpu.dot_dimension_numbers<[1], [0], [0], [1], [0, 0, 1, 1], [], []>} : vector<8x32xbf16>, vector<32x32xbf16>, vector<8x32xf32> -> vector<8x32xf32>
    %c0_10 = arith.constant 0 : index
    %c0_11 = arith.constant 0 : index
    %c0_12 = arith.constant 0 : index
    %11 = vector.load %arg6[%c0_10, %c0_11, %c0_12] : memref<6x1x32xf32, #tpu.memory_space<vmem>>, vector<1x1x32xf32>
    %12 = vector.shape_cast %11 : vector<1x1x32xf32> to vector<1x32xf32>
    %13 = vector.broadcast %12 : vector<1x32xf32> to vector<8x32xf32>
    %14 = arith.addf %10, %13 : vector<8x32xf32>
    %c1 = arith.constant 1 : index
    %c0_13 = arith.constant 0 : index
    %c0_14 = arith.constant 0 : index
    %15 = vector.load %arg5[%c1, %c0_13, %c0_14] : memref<6x32x32xbf16, #tpu.memory_space<vmem>>, vector<1x32x32xbf16>
    %16 = vector.shape_cast %15 : vector<1x32x32xbf16> to vector<32x32xbf16>
    %cst_15 = arith.constant dense<0.000000e+00> : vector<8x32xf32>
    %17 = tpu.matmul %1, %16, %cst_15 {dimension_numbers = #tpu.dot_dimension_numbers<[1], [0], [0], [1], [0, 0, 1, 1], [], []>} : vector<8x32xbf16>, vector<32x32xbf16>, vector<8x32xf32> -> vector<8x32xf32>
    %c1_16 = arith.constant 1 : index
    %c0_17 = arith.constant 0 : index
    %c0_18 = arith.constant 0 : index
    %18 = vector.load %arg6[%c1_16, %c0_17, %c0_18] : memref<6x1x32xf32, #tpu.memory_space<vmem>>, vector<1x1x32xf32>
    %19 = vector.shape_cast %18 : vector<1x1x32xf32> to vector<1x32xf32>
    %20 = vector.broadcast %19 : vector<1x32xf32> to vector<8x32xf32>
    %21 = arith.addf %17, %20 : vector<8x32xf32>
    %c2 = arith.constant 2 : index
    %c0_19 = arith.constant 0 : index
    %c0_20 = arith.constant 0 : index
    %22 = vector.load %arg5[%c2, %c0_19, %c0_20] : memref<6x32x32xbf16, #tpu.memory_space<vmem>>, vector<1x32x32xbf16>
    %23 = vector.shape_cast %22 : vector<1x32x32xbf16> to vector<32x32xbf16>
    %cst_21 = arith.constant dense<0.000000e+00> : vector<8x32xf32>
    %24 = tpu.matmul %1, %23, %cst_21 {dimension_numbers = #tpu.dot_dimension_numbers<[1], [0], [0], [1], [0, 0, 1, 1], [], []>} : vector<8x32xbf16>, vector<32x32xbf16>, vector<8x32xf32> -> vector<8x32xf32>
    %c2_22 = arith.constant 2 : index
    %c0_23 = arith.constant 0 : index
    %c0_24 = arith.constant 0 : index
    %25 = vector.load %arg6[%c2_22, %c0_23, %c0_24] : memref<6x1x32xf32, #tpu.memory_space<vmem>>, vector<1x1x32xf32>
    %26 = vector.shape_cast %25 : vector<1x1x32xf32> to vector<1x32xf32>
    %27 = vector.broadcast %26 : vector<1x32xf32> to vector<8x32xf32>
    %28 = arith.addf %24, %27 : vector<8x32xf32>
    %c3 = arith.constant 3 : index
    %c0_25 = arith.constant 0 : index
    %c0_26 = arith.constant 0 : index
    %29 = vector.load %arg5[%c3, %c0_25, %c0_26] : memref<6x32x32xbf16, #tpu.memory_space<vmem>>, vector<1x32x32xbf16>
    %30 = vector.shape_cast %29 : vector<1x32x32xbf16> to vector<32x32xbf16>
    %cst_27 = arith.constant dense<0.000000e+00> : vector<10x32xf32>
    %31 = tpu.matmul %3, %30, %cst_27 {dimension_numbers = #tpu.dot_dimension_numbers<[1], [0], [0], [1], [0, 0, 1, 1], [], []>} : vector<10x32xbf16>, vector<32x32xbf16>, vector<10x32xf32> -> vector<10x32xf32>
    %c3_28 = arith.constant 3 : index
    %c0_29 = arith.constant 0 : index
    %c0_30 = arith.constant 0 : index
    %32 = vector.load %arg6[%c3_28, %c0_29, %c0_30] : memref<6x1x32xf32, #tpu.memory_space<vmem>>, vector<1x1x32xf32>
    %33 = vector.shape_cast %32 : vector<1x1x32xf32> to vector<1x32xf32>
    %34 = vector.broadcast %33 : vector<1x32xf32> to vector<10x32xf32>
    %35 = arith.addf %31, %34 : vector<10x32xf32>
    %c4 = arith.constant 4 : index
    %c0_31 = arith.constant 0 : index
    %c0_32 = arith.constant 0 : index
    %36 = vector.load %arg5[%c4, %c0_31, %c0_32] : memref<6x32x32xbf16, #tpu.memory_space<vmem>>, vector<1x32x32xbf16>
    %37 = vector.shape_cast %36 : vector<1x32x32xbf16> to vector<32x32xbf16>
    %cst_33 = arith.constant dense<0.000000e+00> : vector<10x32xf32>
    %38 = tpu.matmul %3, %37, %cst_33 {dimension_numbers = #tpu.dot_dimension_numbers<[1], [0], [0], [1], [0, 0, 1, 1], [], []>} : vector<10x32xbf16>, vector<32x32xbf16>, vector<10x32xf32> -> vector<10x32xf32>
    %c4_34 = arith.constant 4 : index
    %c0_35 = arith.constant 0 : index
    %c0_36 = arith.constant 0 : index
    %39 = vector.load %arg6[%c4_34, %c0_35, %c0_36] : memref<6x1x32xf32, #tpu.memory_space<vmem>>, vector<1x1x32xf32>
    %40 = vector.shape_cast %39 : vector<1x1x32xf32> to vector<1x32xf32>
    %41 = vector.broadcast %40 : vector<1x32xf32> to vector<10x32xf32>
    %42 = arith.addf %38, %41 : vector<10x32xf32>
    %c5 = arith.constant 5 : index
    %c0_37 = arith.constant 0 : index
    %c0_38 = arith.constant 0 : index
    %43 = vector.load %arg5[%c5, %c0_37, %c0_38] : memref<6x32x32xbf16, #tpu.memory_space<vmem>>, vector<1x32x32xbf16>
    %44 = vector.shape_cast %43 : vector<1x32x32xbf16> to vector<32x32xbf16>
    %cst_39 = arith.constant dense<0.000000e+00> : vector<10x32xf32>
    %45 = tpu.matmul %3, %44, %cst_39 {dimension_numbers = #tpu.dot_dimension_numbers<[1], [0], [0], [1], [0, 0, 1, 1], [], []>} : vector<10x32xbf16>, vector<32x32xbf16>, vector<10x32xf32> -> vector<10x32xf32>
    %c5_40 = arith.constant 5 : index
    %c0_41 = arith.constant 0 : index
    %c0_42 = arith.constant 0 : index
    %46 = vector.load %arg6[%c5_40, %c0_41, %c0_42] : memref<6x1x32xf32, #tpu.memory_space<vmem>>, vector<1x1x32xf32>
    %47 = vector.shape_cast %46 : vector<1x1x32xf32> to vector<1x32xf32>
    %48 = vector.broadcast %47 : vector<1x32xf32> to vector<10x32xf32>
    %49 = arith.addf %45, %48 : vector<10x32xf32>
    %50 = vector.extract_strided_slice %14 {offsets = [0, 0], sizes = [8, 8], strides = [1, 1]} : vector<8x32xf32> to vector<8x8xf32>
    %51 = arith.truncf %50 : vector<8x8xf32> to vector<8x8xbf16>
    %52 = vector.extract_strided_slice %42 {offsets = [0, 0], sizes = [10, 8], strides = [1, 1]} : vector<10x32xf32> to vector<10x8xf32>
    %53 = arith.truncf %52 : vector<10x8xf32> to vector<10x8xbf16>
    %54 = vector.extract_strided_slice %49 {offsets = [0, 0], sizes = [10, 8], strides = [1, 1]} : vector<10x32xf32> to vector<10x8xf32>
    %55 = arith.truncf %54 : vector<10x8xf32> to vector<10x8xbf16>
    %cst_43 = arith.constant dense<0.000000e+00> : vector<8x10xf32>
    %56 = tpu.matmul %51, %53, %cst_43 {dimension_numbers = #tpu.dot_dimension_numbers<[1], [1], [0], [0], [0, 0, 1, 0], [], []>} : vector<8x8xbf16>, vector<10x8xbf16>, vector<8x10xf32> -> vector<8x10xf32>
    %57 = vector.broadcast %7 : vector<1x10xf32> to vector<8x10xf32>
    %58 = arith.addf %56, %57 : vector<8x10xf32>
    %cst_44 = arith.constant dense<0xFF800000> : vector<8xf32>
    %59 = vector.multi_reduction <maximumf>, %58, %cst_44 [1] : vector<8x10xf32> to vector<8xf32>
    %60 = vector.shape_cast %59 : vector<8xf32> to vector<8x1xf32>
    %61 = vector.broadcast %60 : vector<8x1xf32> to vector<8x10xf32>
    %62 = arith.subf %58, %61 : vector<8x10xf32>
    %63 = math.exp %62 : vector<8x10xf32>
    %cst_45 = arith.constant dense<0.000000e+00> : vector<8xf32>
    %64 = vector.multi_reduction <add>, %63, %cst_45 [1] : vector<8x10xf32> to vector<8xf32>
    %65 = vector.shape_cast %64 : vector<8xf32> to vector<8x1xf32>
    %66 = tpu.reciprocal %65 {approx = true} : vector<8x1xf32> -> vector<8x1xf32>
    %67 = vector.broadcast %66 : vector<8x1xf32> to vector<8x10xf32>
    %68 = arith.mulf %63, %67 : vector<8x10xf32>
    %69 = arith.truncf %68 : vector<8x10xf32> to vector<8x10xbf16>
    %cst_46 = arith.constant dense<0.000000e+00> : vector<8x8xf32>
    %70 = tpu.matmul %69, %55, %cst_46 {dimension_numbers = #tpu.dot_dimension_numbers<[1], [0], [0], [1], [0, 0, 1, 1], [], []>} : vector<8x10xbf16>, vector<10x8xbf16>, vector<8x8xf32> -> vector<8x8xf32>
    %c0_47 = arith.constant 0 : index
    %c0_48 = arith.constant 0 : index
    %71 = vector.load %arg11[%c0_47, %c0_48] : memref<8x32xf32, #tpu.memory_space<vmem>>, vector<8x8xf32>
    tpu.vector_store %arg11[%c0_47, %c0_48], %70 {strides = array<i32>} : memref<8x32xf32, #tpu.memory_space<vmem>>, vector<8x8xf32>,
    %72 = vector.extract_strided_slice %14 {offsets = [0, 8], sizes = [8, 8], strides = [1, 1]} : vector<8x32xf32> to vector<8x8xf32>
    %73 = arith.truncf %72 : vector<8x8xf32> to vector<8x8xbf16>
    %74 = vector.extract_strided_slice %42 {offsets = [0, 8], sizes = [10, 8], strides = [1, 1]} : vector<10x32xf32> to vector<10x8xf32>
    %75 = arith.truncf %74 : vector<10x8xf32> to vector<10x8xbf16>
    %76 = vector.extract_strided_slice %49 {offsets = [0, 8], sizes = [10, 8], strides = [1, 1]} : vector<10x32xf32> to vector<10x8xf32>
    %77 = arith.truncf %76 : vector<10x8xf32> to vector<10x8xbf16>
    %cst_49 = arith.constant dense<0.000000e+00> : vector<8x10xf32>
    %78 = tpu.matmul %73, %75, %cst_49 {dimension_numbers = #tpu.dot_dimension_numbers<[1], [1], [0], [0], [0, 0, 1, 0], [], []>} : vector<8x8xbf16>, vector<10x8xbf16>, vector<8x10xf32> -> vector<8x10xf32>
    %79 = vector.broadcast %7 : vector<1x10xf32> to vector<8x10xf32>
    %80 = arith.addf %78, %79 : vector<8x10xf32>
    %cst_50 = arith.constant dense<0xFF800000> : vector<8xf32>
    %81 = vector.multi_reduction <maximumf>, %80, %cst_50 [1] : vector<8x10xf32> to vector<8xf32>
    %82 = vector.shape_cast %81 : vector<8xf32> to vector<8x1xf32>
    %83 = vector.broadcast %82 : vector<8x1xf32> to vector<8x10xf32>
    %84 = arith.subf %80, %83 : vector<8x10xf32>
    %85 = math.exp %84 : vector<8x10xf32>
    %cst_51 = arith.constant dense<0.000000e+00> : vector<8xf32>
    %86 = vector.multi_reduction <add>, %85, %cst_51 [1] : vector<8x10xf32> to vector<8xf32>
    %87 = vector.shape_cast %86 : vector<8xf32> to vector<8x1xf32>
    %88 = tpu.reciprocal %87 {approx = true} : vector<8x1xf32> -> vector<8x1xf32>
    %89 = vector.broadcast %88 : vector<8x1xf32> to vector<8x10xf32>
    %90 = arith.mulf %85, %89 : vector<8x10xf32>
    %91 = arith.truncf %90 : vector<8x10xf32> to vector<8x10xbf16>
    %cst_52 = arith.constant dense<0.000000e+00> : vector<8x8xf32>
    %92 = tpu.matmul %91, %77, %cst_52 {dimension_numbers = #tpu.dot_dimension_numbers<[1], [0], [0], [1], [0, 0, 1, 1], [], []>} : vector<8x10xbf16>, vector<10x8xbf16>, vector<8x8xf32> -> vector<8x8xf32>
    %c0_53 = arith.constant 0 : index
    %c8 = arith.constant 8 : index
    %93 = vector.load %arg11[%c0_53, %c8] : memref<8x32xf32, #tpu.memory_space<vmem>>, vector<8x8xf32>
    tpu.vector_store %arg11[%c0_53, %c8], %92 {strides = array<i32>} : memref<8x32xf32, #tpu.memory_space<vmem>>, vector<8x8xf32>,
    %94 = vector.extract_strided_slice %14 {offsets = [0, 16], sizes = [8, 8], strides = [1, 1]} : vector<8x32xf32> to vector<8x8xf32>
    %95 = arith.truncf %94 : vector<8x8xf32> to vector<8x8xbf16>
    %96 = vector.extract_strided_slice %42 {offsets = [0, 16], sizes = [10, 8], strides = [1, 1]} : vector<10x32xf32> to vector<10x8xf32>
    %97 = arith.truncf %96 : vector<10x8xf32> to vector<10x8xbf16>
    %98 = vector.extract_strided_slice %49 {offsets = [0, 16], sizes = [10, 8], strides = [1, 1]} : vector<10x32xf32> to vector<10x8xf32>
    %99 = arith.truncf %98 : vector<10x8xf32> to vector<10x8xbf16>
    %cst_54 = arith.constant dense<0.000000e+00> : vector<8x10xf32>
    %100 = tpu.matmul %95, %97, %cst_54 {dimension_numbers = #tpu.dot_dimension_numbers<[1], [1], [0], [0], [0, 0, 1, 0], [], []>} : vector<8x8xbf16>, vector<10x8xbf16>, vector<8x10xf32> -> vector<8x10xf32>
    %101 = vector.broadcast %7 : vector<1x10xf32> to vector<8x10xf32>
    %102 = arith.addf %100, %101 : vector<8x10xf32>
    %cst_55 = arith.constant dense<0xFF800000> : vector<8xf32>
    %103 = vector.multi_reduction <maximumf>, %102, %cst_55 [1] : vector<8x10xf32> to vector<8xf32>
    %104 = vector.shape_cast %103 : vector<8xf32> to vector<8x1xf32>
    %105 = vector.broadcast %104 : vector<8x1xf32> to vector<8x10xf32>
    %106 = arith.subf %102, %105 : vector<8x10xf32>
    %107 = math.exp %106 : vector<8x10xf32>
    %cst_56 = arith.constant dense<0.000000e+00> : vector<8xf32>
    %108 = vector.multi_reduction <add>, %107, %cst_56 [1] : vector<8x10xf32> to vector<8xf32>
    %109 = vector.shape_cast %108 : vector<8xf32> to vector<8x1xf32>
    %110 = tpu.reciprocal %109 {approx = true} : vector<8x1xf32> -> vector<8x1xf32>
    %111 = vector.broadcast %110 : vector<8x1xf32> to vector<8x10xf32>
    %112 = arith.mulf %107, %111 : vector<8x10xf32>
    %113 = arith.truncf %112 : vector<8x10xf32> to vector<8x10xbf16>
    %cst_57 = arith.constant dense<0.000000e+00> : vector<8x8xf32>
    %114 = tpu.matmul %113, %99, %cst_57 {dimension_numbers = #tpu.dot_dimension_numbers<[1], [0], [0], [1], [0, 0, 1, 1], [], []>} : vector<8x10xbf16>, vector<10x8xbf16>, vector<8x8xf32> -> vector<8x8xf32>
    %c0_58 = arith.constant 0 : index
    %c16 = arith.constant 16 : index
    %115 = vector.load %arg11[%c0_58, %c16] : memref<8x32xf32, #tpu.memory_space<vmem>>, vector<8x8xf32>
    tpu.vector_store %arg11[%c0_58, %c16], %114 {strides = array<i32>} : memref<8x32xf32, #tpu.memory_space<vmem>>, vector<8x8xf32>,
    %116 = vector.extract_strided_slice %14 {offsets = [0, 24], sizes = [8, 8], strides = [1, 1]} : vector<8x32xf32> to vector<8x8xf32>
    %117 = arith.truncf %116 : vector<8x8xf32> to vector<8x8xbf16>
    %118 = vector.extract_strided_slice %42 {offsets = [0, 24], sizes = [10, 8], strides = [1, 1]} : vector<10x32xf32> to vector<10x8xf32>
    %119 = arith.truncf %118 : vector<10x8xf32> to vector<10x8xbf16>
    %120 = vector.extract_strided_slice %49 {offsets = [0, 24], sizes = [10, 8], strides = [1, 1]} : vector<10x32xf32> to vector<10x8xf32>
    %121 = arith.truncf %120 : vector<10x8xf32> to vector<10x8xbf16>
    %cst_59 = arith.constant dense<0.000000e+00> : vector<8x10xf32>
    %122 = tpu.matmul %117, %119, %cst_59 {dimension_numbers = #tpu.dot_dimension_numbers<[1], [1], [0], [0], [0, 0, 1, 0], [], []>} : vector<8x8xbf16>, vector<10x8xbf16>, vector<8x10xf32> -> vector<8x10xf32>
    %123 = vector.broadcast %7 : vector<1x10xf32> to vector<8x10xf32>
    %124 = arith.addf %122, %123 : vector<8x10xf32>
    %cst_60 = arith.constant dense<0xFF800000> : vector<8xf32>
    %125 = vector.multi_reduction <maximumf>, %124, %cst_60 [1] : vector<8x10xf32> to vector<8xf32>
    %126 = vector.shape_cast %125 : vector<8xf32> to vector<8x1xf32>
    %127 = vector.broadcast %126 : vector<8x1xf32> to vector<8x10xf32>
    %128 = arith.subf %124, %127 : vector<8x10xf32>
    %129 = math.exp %128 : vector<8x10xf32>
    %cst_61 = arith.constant dense<0.000000e+00> : vector<8xf32>
    %130 = vector.multi_reduction <add>, %129, %cst_61 [1] : vector<8x10xf32> to vector<8xf32>
    %131 = vector.shape_cast %130 : vector<8xf32> to vector<8x1xf32>
    %132 = tpu.reciprocal %131 {approx = true} : vector<8x1xf32> -> vector<8x1xf32>
    %133 = vector.broadcast %132 : vector<8x1xf32> to vector<8x10xf32>
    %134 = arith.mulf %129, %133 : vector<8x10xf32>
    %135 = arith.truncf %134 : vector<8x10xf32> to vector<8x10xbf16>
    %cst_62 = arith.constant dense<0.000000e+00> : vector<8x8xf32>
    %136 = tpu.matmul %135, %121, %cst_62 {dimension_numbers = #tpu.dot_dimension_numbers<[1], [0], [0], [1], [0, 0, 1, 1], [], []>} : vector<8x10xbf16>, vector<10x8xbf16>, vector<8x8xf32> -> vector<8x8xf32>
    %c0_63 = arith.constant 0 : index
    %c24 = arith.constant 24 : index
    %137 = vector.load %arg11[%c0_63, %c24] : memref<8x32xf32, #tpu.memory_space<vmem>>, vector<8x8xf32>
    tpu.vector_store %arg11[%c0_63, %c24], %136 {strides = array<i32>} : memref<8x32xf32, #tpu.memory_space<vmem>>, vector<8x8xf32>,
    %c0_64 = arith.constant 0 : index
    %c0_65 = arith.constant 0 : index
    %138 = vector.load %arg11[%c0_64, %c0_65] : memref<8x32xf32, #tpu.memory_space<vmem>>, vector<8x32xf32>
    %139 = arith.truncf %138 : vector<8x32xf32> to vector<8x32xbf16>
    %c0_66 = arith.constant 0 : index
    %c0_67 = arith.constant 0 : index
    %c0_68 = arith.constant 0 : index
    %140 = vector.load %arg7[%c0_66, %c0_67, %c0_68] : memref<2x32x32xbf16, #tpu.memory_space<vmem>>, vector<1x32x32xbf16>
    %141 = vector.shape_cast %140 : vector<1x32x32xbf16> to vector<32x32xbf16>
    %cst_69 = arith.constant dense<0.000000e+00> : vector<8x32xf32>
    %142 = tpu.matmul %139, %141, %cst_69 {dimension_numbers = #tpu.dot_dimension_numbers<[1], [0], [0], [1], [0, 0, 1, 1], [], []>} : vector<8x32xbf16>, vector<32x32xbf16>, vector<8x32xf32> -> vector<8x32xf32>
    %c0_70 = arith.constant 0 : index
    %c0_71 = arith.constant 0 : index
    %c0_72 = arith.constant 0 : index
    %143 = vector.load %arg8[%c0_70, %c0_71, %c0_72] : memref<2x1x32xf32, #tpu.memory_space<vmem>>, vector<1x1x32xf32>
    %144 = vector.shape_cast %143 : vector<1x1x32xf32> to vector<1x32xf32>
    %145 = vector.broadcast %144 : vector<1x32xf32> to vector<8x32xf32>
    %146 = arith.addf %142, %145 : vector<8x32xf32>
    %c0_73 = arith.constant 0 : index
    %c0_74 = arith.constant 0 : index
    %c0_75 = arith.constant 0 : index
    %147 = vector.load %arg9[%c0_73, %c0_74, %c0_75] : memref<1x8x32xf32, #tpu.memory_space<vmem>>, vector<1x8x32xf32>
    %148 = vector.shape_cast %147 : vector<1x8x32xf32> to vector<8x32xf32>
    %149 = vector.shape_cast %146 : vector<8x32xf32> to vector<1x8x32xf32>
    tpu.vector_store %arg9[%c0_73, %c0_74, %c0_75], %149 {strides = array<i32>} : memref<1x8x32xf32, #tpu.memory_space<vmem>>, vector<1x8x32xf32>,
    %150 = vector.extract_strided_slice %35 {offsets = [0, 0], sizes = [10, 8], strides = [1, 1]} : vector<10x32xf32> to vector<10x8xf32>
    %151 = arith.truncf %150 : vector<10x8xf32> to vector<10x8xbf16>
    %152 = vector.extract_strided_slice %21 {offsets = [0, 0], sizes = [8, 8], strides = [1, 1]} : vector<8x32xf32> to vector<8x8xf32>
    %153 = arith.truncf %152 : vector<8x8xf32> to vector<8x8xbf16>
    %154 = vector.extract_strided_slice %28 {offsets = [0, 0], sizes = [8, 8], strides = [1, 1]} : vector<8x32xf32> to vector<8x8xf32>
    %155 = arith.truncf %154 : vector<8x8xf32> to vector<8x8xbf16>
    %cst_76 = arith.constant dense<0.000000e+00> : vector<10x8xf32>
    %156 = tpu.matmul %151, %153, %cst_76 {dimension_numbers = #tpu.dot_dimension_numbers<[1], [1], [0], [0], [0, 0, 1, 0], [], []>} : vector<10x8xbf16>, vector<8x8xbf16>, vector<10x8xf32> -> vector<10x8xf32>
    %157 = vector.broadcast %5 : vector<1x8xf32> to vector<10x8xf32>
    %158 = arith.addf %156, %157 : vector<10x8xf32>
    %cst_77 = arith.constant dense<0xFF800000> : vector<10xf32>
    %159 = vector.multi_reduction <maximumf>, %158, %cst_77 [1] : vector<10x8xf32> to vector<10xf32>
    %160 = vector.shape_cast %159 : vector<10xf32> to vector<10x1xf32>
    %161 = vector.broadcast %160 : vector<10x1xf32> to vector<10x8xf32>
    %162 = arith.subf %158, %161 : vector<10x8xf32>
    %163 = math.exp %162 : vector<10x8xf32>
    %cst_78 = arith.constant dense<0.000000e+00> : vector<10xf32>
    %164 = vector.multi_reduction <add>, %163, %cst_78 [1] : vector<10x8xf32> to vector<10xf32>
    %165 = vector.shape_cast %164 : vector<10xf32> to vector<10x1xf32>
    %166 = tpu.reciprocal %165 {approx = true} : vector<10x1xf32> -> vector<10x1xf32>
    %167 = vector.broadcast %166 : vector<10x1xf32> to vector<10x8xf32>
    %168 = arith.mulf %163, %167 : vector<10x8xf32>
    %169 = arith.truncf %168 : vector<10x8xf32> to vector<10x8xbf16>
    %cst_79 = arith.constant dense<0.000000e+00> : vector<10x8xf32>
    %170 = tpu.matmul %169, %155, %cst_79 {dimension_numbers = #tpu.dot_dimension_numbers<[1], [0], [0], [1], [0, 0, 1, 1], [], []>} : vector<10x8xbf16>, vector<8x8xbf16>, vector<10x8xf32> -> vector<10x8xf32>
    %c0_80 = arith.constant 0 : index
    %c0_81 = arith.constant 0 : index
    %171 = vector.load %arg12[%c0_80, %c0_81] : memref<10x32xf32, #tpu.memory_space<vmem>>, vector<10x8xf32>
    tpu.vector_store %arg12[%c0_80, %c0_81], %170 {strides = array<i32>} : memref<10x32xf32, #tpu.memory_space<vmem>>, vector<10x8xf32>,
    %172 = vector.extract_strided_slice %35 {offsets = [0, 8], sizes = [10, 8], strides = [1, 1]} : vector<10x32xf32> to vector<10x8xf32>
    %173 = arith.truncf %172 : vector<10x8xf32> to vector<10x8xbf16>
    %174 = vector.extract_strided_slice %21 {offsets = [0, 8], sizes = [8, 8], strides = [1, 1]} : vector<8x32xf32> to vector<8x8xf32>
    %175 = arith.truncf %174 : vector<8x8xf32> to vector<8x8xbf16>
    %176 = vector.extract_strided_slice %28 {offsets = [0, 8], sizes = [8, 8], strides = [1, 1]} : vector<8x32xf32> to vector<8x8xf32>
    %177 = arith.truncf %176 : vector<8x8xf32> to vector<8x8xbf16>
    %cst_82 = arith.constant dense<0.000000e+00> : vector<10x8xf32>
    %178 = tpu.matmul %173, %175, %cst_82 {dimension_numbers = #tpu.dot_dimension_numbers<[1], [1], [0], [0], [0, 0, 1, 0], [], []>} : vector<10x8xbf16>, vector<8x8xbf16>, vector<10x8xf32> -> vector<10x8xf32>
    %179 = vector.broadcast %5 : vector<1x8xf32> to vector<10x8xf32>
    %180 = arith.addf %178, %179 : vector<10x8xf32>
    %cst_83 = arith.constant dense<0xFF800000> : vector<10xf32>
    %181 = vector.multi_reduction <maximumf>, %180, %cst_83 [1] : vector<10x8xf32> to vector<10xf32>
    %182 = vector.shape_cast %181 : vector<10xf32> to vector<10x1xf32>
    %183 = vector.broadcast %182 : vector<10x1xf32> to vector<10x8xf32>
    %184 = arith.subf %180, %183 : vector<10x8xf32>
    %185 = math.exp %184 : vector<10x8xf32>
    %cst_84 = arith.constant dense<0.000000e+00> : vector<10xf32>
    %186 = vector.multi_reduction <add>, %185, %cst_84 [1] : vector<10x8xf32> to vector<10xf32>
    %187 = vector.shape_cast %186 : vector<10xf32> to vector<10x1xf32>
    %188 = tpu.reciprocal %187 {approx = true} : vector<10x1xf32> -> vector<10x1xf32>
    %189 = vector.broadcast %188 : vector<10x1xf32> to vector<10x8xf32>
    %190 = arith.mulf %185, %189 : vector<10x8xf32>
    %191 = arith.truncf %190 : vector<10x8xf32> to vector<10x8xbf16>
    %cst_85 = arith.constant dense<0.000000e+00> : vector<10x8xf32>
    %192 = tpu.matmul %191, %177, %cst_85 {dimension_numbers = #tpu.dot_dimension_numbers<[1], [0], [0], [1], [0, 0, 1, 1], [], []>} : vector<10x8xbf16>, vector<8x8xbf16>, vector<10x8xf32> -> vector<10x8xf32>
    %c0_86 = arith.constant 0 : index
    %c8_87 = arith.constant 8 : index
    %193 = vector.load %arg12[%c0_86, %c8_87] : memref<10x32xf32, #tpu.memory_space<vmem>>, vector<10x8xf32>
    tpu.vector_store %arg12[%c0_86, %c8_87], %192 {strides = array<i32>} : memref<10x32xf32, #tpu.memory_space<vmem>>, vector<10x8xf32>,
    %194 = vector.extract_strided_slice %35 {offsets = [0, 16], sizes = [10, 8], strides = [1, 1]} : vector<10x32xf32> to vector<10x8xf32>
    %195 = arith.truncf %194 : vector<10x8xf32> to vector<10x8xbf16>
    %196 = vector.extract_strided_slice %21 {offsets = [0, 16], sizes = [8, 8], strides = [1, 1]} : vector<8x32xf32> to vector<8x8xf32>
    %197 = arith.truncf %196 : vector<8x8xf32> to vector<8x8xbf16>
    %198 = vector.extract_strided_slice %28 {offsets = [0, 16], sizes = [8, 8], strides = [1, 1]} : vector<8x32xf32> to vector<8x8xf32>
    %199 = arith.truncf %198 : vector<8x8xf32> to vector<8x8xbf16>
    %cst_88 = arith.constant dense<0.000000e+00> : vector<10x8xf32>
    %200 = tpu.matmul %195, %197, %cst_88 {dimension_numbers = #tpu.dot_dimension_numbers<[1], [1], [0], [0], [0, 0, 1, 0], [], []>} : vector<10x8xbf16>, vector<8x8xbf16>, vector<10x8xf32> -> vector<10x8xf32>
    %201 = vector.broadcast %5 : vector<1x8xf32> to vector<10x8xf32>
    %202 = arith.addf %200, %201 : vector<10x8xf32>
    %cst_89 = arith.constant dense<0xFF800000> : vector<10xf32>
    %203 = vector.multi_reduction <maximumf>, %202, %cst_89 [1] : vector<10x8xf32> to vector<10xf32>
    %204 = vector.shape_cast %203 : vector<10xf32> to vector<10x1xf32>
    %205 = vector.broadcast %204 : vector<10x1xf32> to vector<10x8xf32>
    %206 = arith.subf %202, %205 : vector<10x8xf32>
    %207 = math.exp %206 : vector<10x8xf32>
    %cst_90 = arith.constant dense<0.000000e+00> : vector<10xf32>
    %208 = vector.multi_reduction <add>, %207, %cst_90 [1] : vector<10x8xf32> to vector<10xf32>
    %209 = vector.shape_cast %208 : vector<10xf32> to vector<10x1xf32>
    %210 = tpu.reciprocal %209 {approx = true} : vector<10x1xf32> -> vector<10x1xf32>
    %211 = vector.broadcast %210 : vector<10x1xf32> to vector<10x8xf32>
    %212 = arith.mulf %207, %211 : vector<10x8xf32>
    %213 = arith.truncf %212 : vector<10x8xf32> to vector<10x8xbf16>
    %cst_91 = arith.constant dense<0.000000e+00> : vector<10x8xf32>
    %214 = tpu.matmul %213, %199, %cst_91 {dimension_numbers = #tpu.dot_dimension_numbers<[1], [0], [0], [1], [0, 0, 1, 1], [], []>} : vector<10x8xbf16>, vector<8x8xbf16>, vector<10x8xf32> -> vector<10x8xf32>
    %c0_92 = arith.constant 0 : index
    %c16_93 = arith.constant 16 : index
    %215 = vector.load %arg12[%c0_92, %c16_93] : memref<10x32xf32, #tpu.memory_space<vmem>>, vector<10x8xf32>
    tpu.vector_store %arg12[%c0_92, %c16_93], %214 {strides = array<i32>} : memref<10x32xf32, #tpu.memory_space<vmem>>, vector<10x8xf32>,
    %216 = vector.extract_strided_slice %35 {offsets = [0, 24], sizes = [10, 8], strides = [1, 1]} : vector<10x32xf32> to vector<10x8xf32>
    %217 = arith.truncf %216 : vector<10x8xf32> to vector<10x8xbf16>
    %218 = vector.extract_strided_slice %21 {offsets = [0, 24], sizes = [8, 8], strides = [1, 1]} : vector<8x32xf32> to vector<8x8xf32>
    %219 = arith.truncf %218 : vector<8x8xf32> to vector<8x8xbf16>
    %220 = vector.extract_strided_slice %28 {offsets = [0, 24], sizes = [8, 8], strides = [1, 1]} : vector<8x32xf32> to vector<8x8xf32>
    %221 = arith.truncf %220 : vector<8x8xf32> to vector<8x8xbf16>
    %cst_94 = arith.constant dense<0.000000e+00> : vector<10x8xf32>
    %222 = tpu.matmul %217, %219, %cst_94 {dimension_numbers = #tpu.dot_dimension_numbers<[1], [1], [0], [0], [0, 0, 1, 0], [], []>} : vector<10x8xbf16>, vector<8x8xbf16>, vector<10x8xf32> -> vector<10x8xf32>
    %223 = vector.broadcast %5 : vector<1x8xf32> to vector<10x8xf32>
    %224 = arith.addf %222, %223 : vector<10x8xf32>
    %cst_95 = arith.constant dense<0xFF800000> : vector<10xf32>
    %225 = vector.multi_reduction <maximumf>, %224, %cst_95 [1] : vector<10x8xf32> to vector<10xf32>
    %226 = vector.shape_cast %225 : vector<10xf32> to vector<10x1xf32>
    %227 = vector.broadcast %226 : vector<10x1xf32> to vector<10x8xf32>
    %228 = arith.subf %224, %227 : vector<10x8xf32>
    %229 = math.exp %228 : vector<10x8xf32>
    %cst_96 = arith.constant dense<0.000000e+00> : vector<10xf32>
    %230 = vector.multi_reduction <add>, %229, %cst_96 [1] : vector<10x8xf32> to vector<10xf32>
    %231 = vector.shape_cast %230 : vector<10xf32> to vector<10x1xf32>
    %232 = tpu.reciprocal %231 {approx = true} : vector<10x1xf32> -> vector<10x1xf32>
    %233 = vector.broadcast %232 : vector<10x1xf32> to vector<10x8xf32>
    %234 = arith.mulf %229, %233 : vector<10x8xf32>
    %235 = arith.truncf %234 : vector<10x8xf32> to vector<10x8xbf16>
    %cst_97 = arith.constant dense<0.000000e+00> : vector<10x8xf32>
    %236 = tpu.matmul %235, %221, %cst_97 {dimension_numbers = #tpu.dot_dimension_numbers<[1], [0], [0], [1], [0, 0, 1, 1], [], []>} : vector<10x8xbf16>, vector<8x8xbf16>, vector<10x8xf32> -> vector<10x8xf32>
    %c0_98 = arith.constant 0 : index
    %c24_99 = arith.constant 24 : index
    %237 = vector.load %arg12[%c0_98, %c24_99] : memref<10x32xf32, #tpu.memory_space<vmem>>, vector<10x8xf32>
    tpu.vector_store %arg12[%c0_98, %c24_99], %236 {strides = array<i32>} : memref<10x32xf32, #tpu.memory_space<vmem>>, vector<10x8xf32>,
    %c0_100 = arith.constant 0 : index
    %c0_101 = arith.constant 0 : index
    %238 = vector.load %arg12[%c0_100, %c0_101] : memref<10x32xf32, #tpu.memory_space<vmem>>, vector<10x32xf32>
    %239 = arith.truncf %238 : vector<10x32xf32> to vector<10x32xbf16>
    %c1_102 = arith.constant 1 : index
    %c0_103 = arith.constant 0 : index
    %c0_104 = arith.constant 0 : index
    %240 = vector.load %arg7[%c1_102, %c0_103, %c0_104] : memref<2x32x32xbf16, #tpu.memory_space<vmem>>, vector<1x32x32xbf16>
    %241 = vector.shape_cast %240 : vector<1x32x32xbf16> to vector<32x32xbf16>
    %cst_105 = arith.constant dense<0.000000e+00> : vector<10x32xf32>
    %242 = tpu.matmul %239, %241, %cst_105 {dimension_numbers = #tpu.dot_dimension_numbers<[1], [0], [0], [1], [0, 0, 1, 1], [], []>} : vector<10x32xbf16>, vector<32x32xbf16>, vector<10x32xf32> -> vector<10x32xf32>
    %c1_106 = arith.constant 1 : index
    %c0_107 = arith.constant 0 : index
    %c0_108 = arith.constant 0 : index
    %243 = vector.load %arg8[%c1_106, %c0_107, %c0_108] : memref<2x1x32xf32, #tpu.memory_space<vmem>>, vector<1x1x32xf32>
    %244 = vector.shape_cast %243 : vector<1x1x32xf32> to vector<1x32xf32>
    %245 = vector.broadcast %244 : vector<1x32xf32> to vector<10x32xf32>
    %246 = arith.addf %242, %245 : vector<10x32xf32>
    %c0_109 = arith.constant 0 : index
    %c0_110 = arith.constant 0 : index
    %c0_111 = arith.constant 0 : index
    %247 = vector.load %arg10[%c0_109, %c0_110, %c0_111] : memref<1x10x32xf32, #tpu.memory_space<vmem>>, vector<1x10x32xf32>
    %248 = vector.shape_cast %247 : vector<1x10x32xf32> to vector<10x32xf32>
    %249 = vector.shape_cast %246 : vector<10x32xf32> to vector<1x10x32xf32>
    tpu.vector_store %arg10[%c0_109, %c0_110, %c0_111], %249 {strides = array<i32>} : memref<1x10x32xf32, #tpu.memory_space<vmem>>, vector<1x10x32xf32>,
    return
  }
  func.func @transform_0(%arg0: i32) -> (i32, i32, i32) {
    %c0_i32 = arith.constant 0 : i32
    %c0_i32_0 = arith.constant 0 : i32
    %c0_i32_1 = arith.constant 0 : i32
    return %arg0, %c0_i32, %c0_i32_0 : i32, i32, i32
  }
  func.func @transform_1(%arg0: i32) -> (i32, i32, i32) {
    %c0_i32 = arith.constant 0 : i32
    %c0_i32_0 = arith.constant 0 : i32
    %c0_i32_1 = arith.constant 0 : i32
    return %arg0, %c0_i32, %c0_i32_0 : i32, i32, i32
  }
  func.func @transform_2(%arg0: i32) -> (i32, i32) {
    %c0_i32 = arith.constant 0 : i32
    %c0_i32_0 = arith.constant 0 : i32
    %c0_i32_1 = arith.constant 0 : i32
    return %c0_i32, %c0_i32_0 : i32, i32
  }
  func.func @transform_3(%arg0: i32) -> (i32, i32) {
    %c0_i32 = arith.constant 0 : i32
    %c0_i32_0 = arith.constant 0 : i32
    %c0_i32_1 = arith.constant 0 : i32
    return %c0_i32, %c0_i32_0 : i32, i32
  }
  func.func @transform_4(%arg0: i32) -> (i32, i32, i32) {
    %c0_i32 = arith.constant 0 : i32
    %c0_i32_0 = arith.constant 0 : i32
    %c0_i32_1 = arith.constant 0 : i32
    %c0_i32_2 = arith.constant 0 : i32
    return %c0_i32, %c0_i32_0, %c0_i32_1 : i32, i32, i32
  }
  func.func @transform_5(%arg0: i32) -> (i32, i32, i32) {
    %c0_i32 = arith.constant 0 : i32
    %c0_i32_0 = arith.constant 0 : i32
    %c0_i32_1 = arith.constant 0 : i32
    %c0_i32_2 = arith.constant 0 : i32
    return %c0_i32, %c0_i32_0, %c0_i32_1 : i32, i32, i32
  }
  func.func @transform_6(%arg0: i32) -> (i32, i32, i32) {
    %c0_i32 = arith.constant 0 : i32
    %c0_i32_0 = arith.constant 0 : i32
    %c0_i32_1 = arith.constant 0 : i32
    %c0_i32_2 = arith.constant 0 : i32
    return %c0_i32, %c0_i32_0, %c0_i32_1 : i32, i32, i32
  }
  func.func @transform_7(%arg0: i32) -> (i32, i32, i32) {
    %c0_i32 = arith.constant 0 : i32
    %c0_i32_0 = arith.constant 0 : i32
    %c0_i32_1 = arith.constant 0 : i32
    %c0_i32_2 = arith.constant 0 : i32
    return %c0_i32, %c0_i32_0, %c0_i32_1 : i32, i32, i32
  }
  func.func @transform_8(%arg0: i32) -> (i32, i32, i32) {
    %c0_i32 = arith.constant 0 : i32
    %c0_i32_0 = arith.constant 0 : i32
    %c0_i32_1 = arith.constant 0 : i32
    return %arg0, %c0_i32, %c0_i32_0 : i32, i32, i32
  }
  func.func @transform_9(%arg0: i32) -> (i32, i32, i32) {
    %c0_i32 = arith.constant 0 : i32
    %c0_i32_0 = arith.constant 0 : i32
    %c0_i32_1 = arith.constant 0 : i32
    return %arg0, %c0_i32, %c0_i32_0 : i32, i32, i32
  }
}

</mosaic_0001>

<llo_original>
// kernel: _lambda_.1
$region0: #{_lambda_.1}
  #allocation0 [shape = 'u32[]', space=smem, size = 0x4, offset = 0x4, fixed_abs, tag = 'smem constant byte address 0x4 - core index']
  #allocation1 [shape = 'u32[72,128]{1,0:T(1,128)}', space=vmem, size = 0x9000, scoped, tag = 'internal scratch']
  #allocation2 [shape = 'f32[8,32]{1,0:T(8,128)}', space=vmem, size = 0x1000, scoped, tag = 'scratch operand']
  #allocation3 [shape = 'f32[10,32]{1,0:T(8,128)}', space=vmem, size = 0x2000, scoped, tag = 'scratch operand']
  %s0 = inlined_call_operand.vmem [shape: bf16[2,8,32], index: 0, kind: input, shape index: {}]
  %s1 = inlined_call_operand.vmem [shape: bf16[2,10,32], index: 1, kind: input, shape index: {}]
  %s2 = inlined_call_operand.vmem [shape: f32[2,8], index: 2, kind: input, shape index: {}]
  %s3 = inlined_call_operand.vmem [shape: f32[2,10], index: 3, kind: input, shape index: {}]
  %s4 = inlined_call_operand.hbm [shape: bf16[6,32,32], index: 4, kind: input, shape index: {}]
  %s5 = inlined_call_operand.vmem [shape: f32[6,1,32], index: 5, kind: input, shape index: {}]
  %s6 = inlined_call_operand.vmem [shape: bf16[2,32,32], index: 6, kind: input, shape index: {}]
  %s7 = inlined_call_operand.vmem [shape: f32[2,1,32], index: 7, kind: input, shape index: {}]
  %s8 = inlined_call_operand.vmem [shape: f32[2,8,32], index: 8, kind: output, shape index: {0}]
  %s9 = inlined_call_operand.vmem [shape: f32[2,10,32], index: 9, kind: output, shape index: {1}]
  %10 = xla_tuple %s8, %s9
  %s11 = sld [smem:[#allocation0]]
  $region77: #{_lambda_.1} parent=0
    _
  %s13 = ssub.s32 1, %s11
  %s14 = scalar_select 0, %s13, %s11
  $region1: #{_lambda_.1} parent=0
    #allocation4 [shape = 'u8[49152]{0}', space=vmem, size = 0xc000, scoped, tag = 'input window, operand 4, single buffered']
    #allocation5 [shape = 's32[2]{0}', space=sflag, size = 0x8, scoped, tag = 'scoped memory for _lambda_.1']
    %15 = vsyncpa [#allocation5], 0
    loop: start=0, step=1, limit=4
    $region2: #{_lambda_.1} parent=1 // loop_pre_header
      _
    $region3: #{_lambda_.1} parent=1 // loop_header
      %s17 = sphi 0, %s21
      %p18 = scmp.ge.s32.totalorder %s17, 4
      %s27 = sphi 0, %s29
      %s30 = sphi 0, %s27
      %s31 = sphi 0, %s30
      %s47 = sphi 0, %s31
      %s53 = sphi 0, %s55
      %s56 = sphi 0, %s53
      %s57 = sphi 0, %s56
      %s73 = sphi 0, %s57
      %s77 = sphi 0, %s77
      %s79 = sphi 0, %s77
      %s80 = sphi 0, %s79
      %s94 = sphi 0, %s80
      %s98 = sphi 0, %s98
      %s100 = sphi 0, %s98
      %s101 = sphi 0, %s100
      %s115 = sphi 0, %s101
      %s119 = sphi 0, %s119
      %s121 = sphi 0, %s119
      %s122 = sphi 0, %s121
      %s136 = sphi 0, %s122
      %s140 = sphi 0, %s140
      %s142 = sphi 0, %s140
      %s143 = sphi 0, %s142
      %s157 = sphi 0, %s143
      %s161 = sphi 0, %s161
      %s163 = sphi 0, %s161
      %s164 = sphi 0, %s163
      %s178 = sphi 0, %s164
      %s182 = sphi 0, %s182
      %s184 = sphi 0, %s182
      %s185 = sphi 0, %s184
      %s199 = sphi 0, %s185
      %s205 = sphi 0, %s207
      %s208 = sphi 0, %s205
      %s209 = sphi 0, %s208
      %s225 = sphi 0, %s209
      %s231 = sphi 0, %s233
      %s234 = sphi 0, %s231
      %s235 = sphi 0, %s234
      %s251 = sphi 0, %s235
    $region4: #{_lambda_.1} parent=1 // loop_header_branch
      %20 = sbr.rel (%p18) target = $region8
    $region5: #{_lambda_.1} parent=1 // loop_body
      %s22 = ssub.s32 %s17, 1
      %s23 = ssub.s32 %s17, 2
      %s24 = sadd.s32 %s17, 1
      %s25 = ssub.s32 %s17, %s24
      %p26 = scmp.eq.s32.totalorder %s25, 0
      %s28 = sadd.s32 %s27, 1
      %s29 = scalar_select %p26, %s27, %s28
      %p32 = pneg %p26
      %p33 = scmp.eq.s32.totalorder %s17, 1
      %p34 = por %p32, %p33
      %p35 = scmp.ne.s32.totalorder %s27, %s30
      %p36 = scmp.eq.s32.totalorder %s17, 0
      %p37 = por %p35, %p36
      %p38 = scmp.ne.s32.totalorder %s27, %s30
      %p39 = scmp.eq.s32.totalorder %s22, 1
      %p40 = por %p38, %p39
      %p41 = scmp.ne.s32.totalorder %s30, %s31
      %p42 = scmp.eq.s32.totalorder %s22, 0
      %p43 = por %p41, %p42
      %p44 = scmp.ne.s32.totalorder %s30, %s31
      %p45 = scmp.eq.s32.totalorder %s23, 1
      %p46 = por %p44, %p45
      %p48 = scmp.ne.s32.totalorder %s31, %s47
      %p49 = scmp.eq.s32.totalorder %s23, 0
      %p50 = por %p48, %p49
      %s51 = ssub.s32 %s17, %s24
      %p52 = scmp.eq.s32.totalorder %s51, 0
      %s54 = sadd.s32 %s53, 1
      %s55 = scalar_select %p52, %s53, %s54
      %p58 = pneg %p52
      %p59 = scmp.eq.s32.totalorder %s17, 1
      %p60 = por %p58, %p59
      %p61 = scmp.ne.s32.totalorder %s53, %s56
      %p62 = scmp.eq.s32.totalorder %s17, 0
      %p63 = por %p61, %p62
      %p64 = scmp.ne.s32.totalorder %s53, %s56
      %p65 = scmp.eq.s32.totalorder %s22, 1
      %p66 = por %p64, %p65
      %p67 = scmp.ne.s32.totalorder %s56, %s57
      %p68 = scmp.eq.s32.totalorder %s22, 0
      %p69 = por %p67, %p68
      %p70 = scmp.ne.s32.totalorder %s56, %s57
      %p71 = scmp.eq.s32.totalorder %s23, 1
      %p72 = por %p70, %p71
      %p74 = scmp.ne.s32.totalorder %s57, %s73
      %p75 = scmp.eq.s32.totalorder %s23, 0
      %p76 = por %p74, %p75
      %s78 = sadd.s32 %s77, 1
      %p81 = scmp.eq.s32.totalorder %s17, 1
      %p82 = scmp.ne.s32.totalorder %s77, %s79
      %p83 = scmp.eq.s32.totalorder %s17, 0
      %p84 = por %p82, %p83
      %p85 = scmp.ne.s32.totalorder %s77, %s79
      %p86 = scmp.eq.s32.totalorder %s22, 1
      %p87 = por %p85, %p86
      %p88 = scmp.ne.s32.totalorder %s79, %s80
      %p89 = scmp.eq.s32.totalorder %s22, 0
      %p90 = por %p88, %p89
      %p91 = scmp.ne.s32.totalorder %s79, %s80
      %p92 = scmp.eq.s32.totalorder %s23, 1
      %p93 = por %p91, %p92
      %p95 = scmp.ne.s32.totalorder %s80, %s94
      %p96 = scmp.eq.s32.totalorder %s23, 0
      %p97 = por %p95, %p96
      %s99 = sadd.s32 %s98, 1
      %p102 = scmp.eq.s32.totalorder %s17, 1
      %p103 = scmp.ne.s32.totalorder %s98, %s100
      %p104 = scmp.eq.s32.totalorder %s17, 0
      %p105 = por %p103, %p104
      %p106 = scmp.ne.s32.totalorder %s98, %s100
      %p107 = scmp.eq.s32.totalorder %s22, 1
      %p108 = por %p106, %p107
      %p109 = scmp.ne.s32.totalorder %s100, %s101
      %p110 = scmp.eq.s32.totalorder %s22, 0
      %p111 = por %p109, %p110
      %p112 = scmp.ne.s32.totalorder %s100, %s101
      %p113 = scmp.eq.s32.totalorder %s23, 1
      %p114 = por %p112, %p113
      %p116 = scmp.ne.s32.totalorder %s101, %s115
      %p117 = scmp.eq.s32.totalorder %s23, 0
      %p118 = por %p116, %p117
      %s120 = sadd.s32 %s119, 1
      %p123 = scmp.eq.s32.totalorder %s17, 1
      %p124 = scmp.ne.s32.totalorder %s119, %s121
      %p125 = scmp.eq.s32.totalorder %s17, 0
      %p126 = por %p124, %p125
      %p127 = scmp.ne.s32.totalorder %s119, %s121
      %p128 = scmp.eq.s32.totalorder %s22, 1
      %p129 = por %p127, %p128
      %p130 = scmp.ne.s32.totalorder %s121, %s122
      %p131 = scmp.eq.s32.totalorder %s22, 0
      %p132 = por %p130, %p131
      %p133 = scmp.ne.s32.totalorder %s121, %s122
      %p134 = scmp.eq.s32.totalorder %s23, 1
      %p135 = por %p133, %p134
      %p137 = scmp.ne.s32.totalorder %s122, %s136
      %p138 = scmp.eq.s32.totalorder %s23, 0
      %p139 = por %p137, %p138
      %s141 = sadd.s32 %s140, 1
      %p144 = scmp.eq.s32.totalorder %s17, 1
      %p145 = scmp.ne.s32.totalorder %s140, %s142
      %p146 = scmp.eq.s32.totalorder %s17, 0
      %p147 = por %p145, %p146
      %p148 = scmp.ne.s32.totalorder %s140, %s142
      %p149 = scmp.eq.s32.totalorder %s22, 1
      %p150 = por %p148, %p149
      %p151 = scmp.ne.s32.totalorder %s142, %s143
      %p152 = scmp.eq.s32.totalorder %s22, 0
      %p153 = por %p151, %p152
      %p154 = scmp.ne.s32.totalorder %s142, %s143
      %p155 = scmp.eq.s32.totalorder %s23, 1
      %p156 = por %p154, %p155
      %p158 = scmp.ne.s32.totalorder %s143, %s157
      %p159 = scmp.eq.s32.totalorder %s23, 0
      %p160 = por %p158, %p159
      %s162 = sadd.s32 %s161, 1
      %p165 = scmp.eq.s32.totalorder %s17, 1
      %p166 = scmp.ne.s32.totalorder %s161, %s163
      %p167 = scmp.eq.s32.totalorder %s17, 0
      %p168 = por %p166, %p167
      %p169 = scmp.ne.s32.totalorder %s161, %s163
      %p170 = scmp.eq.s32.totalorder %s22, 1
      %p171 = por %p169, %p170
      %p172 = scmp.ne.s32.totalorder %s163, %s164
      %p173 = scmp.eq.s32.totalorder %s22, 0
      %p174 = por %p172, %p173
      %p175 = scmp.ne.s32.totalorder %s163, %s164
      %p176 = scmp.eq.s32.totalorder %s23, 1
      %p177 = por %p175, %p176
      %p179 = scmp.ne.s32.totalorder %s164, %s178
      %p180 = scmp.eq.s32.totalorder %s23, 0
      %p181 = por %p179, %p180
      %s183 = sadd.s32 %s182, 1
      %p186 = scmp.eq.s32.totalorder %s17, 1
      %p187 = scmp.ne.s32.totalorder %s182, %s184
      %p188 = scmp.eq.s32.totalorder %s17, 0
      %p189 = por %p187, %p188
      %p190 = scmp.ne.s32.totalorder %s182, %s184
      %p191 = scmp.eq.s32.totalorder %s22, 1
      %p192 = por %p190, %p191
      %p193 = scmp.ne.s32.totalorder %s184, %s185
      %p194 = scmp.eq.s32.totalorder %s22, 0
      %p195 = por %p193, %p194
      %p196 = scmp.ne.s32.totalorder %s184, %s185
      %p197 = scmp.eq.s32.totalorder %s23, 1
      %p198 = por %p196, %p197
      %p200 = scmp.ne.s32.totalorder %s185, %s199
      %p201 = scmp.eq.s32.totalorder %s23, 0
      %p202 = por %p200, %p201
      %s203 = ssub.s32 %s17, %s24
      %p204 = scmp.eq.s32.totalorder %s203, 0
      %s206 = sadd.s32 %s205, 1
      %s207 = scalar_select %p204, %s205, %s206
      %p210 = pneg %p204
      %p211 = scmp.eq.s32.totalorder %s17, 1
      %p212 = por %p210, %p211
      %p213 = scmp.ne.s32.totalorder %s205, %s208
      %p214 = scmp.eq.s32.totalorder %s17, 0
      %p215 = por %p213, %p214
      %p216 = scmp.ne.s32.totalorder %s205, %s208
      %p217 = scmp.eq.s32.totalorder %s22, 1
      %p218 = por %p216, %p217
      %p219 = scmp.ne.s32.totalorder %s208, %s209
      %p220 = scmp.eq.s32.totalorder %s22, 0
      %p221 = por %p219, %p220
      %p222 = scmp.ne.s32.totalorder %s208, %s209
      %p223 = scmp.eq.s32.totalorder %s23, 1
      %p224 = por %p222, %p223
      %p226 = scmp.ne.s32.totalorder %s209, %s225
      %p227 = scmp.eq.s32.totalorder %s23, 0
      %p228 = por %p226, %p227
      %s229 = ssub.s32 %s17, %s24
      %p230 = scmp.eq.s32.totalorder %s229, 0
      %s232 = sadd.s32 %s231, 1
      %s233 = scalar_select %p230, %s231, %s232
      %p236 = pneg %p230
      %p237 = scmp.eq.s32.totalorder %s17, 1
      %p238 = por %p236, %p237
      %p239 = scmp.ne.s32.totalorder %s231, %s234
      %p240 = scmp.eq.s32.totalorder %s17, 0
      %p241 = por %p239, %p240
      %p242 = scmp.ne.s32.totalorder %s231, %s234
      %p243 = scmp.eq.s32.totalorder %s22, 1
      %p244 = por %p242, %p243
      %p245 = scmp.ne.s32.totalorder %s234, %s235
      %p246 = scmp.eq.s32.totalorder %s22, 0
      %p247 = por %p245, %p246
      %p248 = scmp.ne.s32.totalorder %s234, %s235
      %p249 = scmp.eq.s32.totalorder %s23, 1
      %p250 = por %p248, %p249
      %p252 = scmp.ne.s32.totalorder %s235, %s251
      %p253 = scmp.eq.s32.totalorder %s23, 0
      %p254 = por %p252, %p253
      %p255 = scmp.le.s32.totalorder 1, %s17
      %p256 = scmp.lt.s32.totalorder %s17, 3
      %p257 = pnand %p255, %p256
      %p258 = pneg %p257
      // Predicated region
      $region9: #{_lambda_.1} parent=5 // pred_check
        _
      $region10: #{_lambda_.1} parent=5 // pred_check_branch
        %260 = sbr.rel (%p257) target = $region12
      $region11: #{_lambda_.1} parent=5 // pred_region
        %s261 = ssub.s32 %s17, 1
        // Predicated region
        $region13: #{_lambda_.1} parent=11 // pred_check
          %p262 = pneg %p90
        $region14: #{_lambda_.1} parent=11 // pred_check_branch
          %264 = sbr.rel (%p262) target = $region16
        $region15: #{_lambda_.1} parent=11 // pred_region
          _
        $region16: #{_lambda_.1} parent=11 // pred_fallthru
          _
        // Predicated region
        $region17: #{_lambda_.1} parent=11 // pred_check
          %p265 = pneg %p111
        $region18: #{_lambda_.1} parent=11 // pred_check_branch
          %267 = sbr.rel (%p265) target = $region20
        $region19: #{_lambda_.1} parent=11 // pred_region
          _
        $region20: #{_lambda_.1} parent=11 // pred_fallthru
          _
        // Predicated region
        $region21: #{_lambda_.1} parent=11 // pred_check
          %p268 = pneg %p132
        $region22: #{_lambda_.1} parent=11 // pred_check_branch
          %270 = sbr.rel (%p268) target = $region24
        $region23: #{_lambda_.1} parent=11 // pred_region
          %272 = vsyncadd [#allocation5], 0
          %s273 = sshll.u32 %s4, 4
          %s274 = int_to_ptr.hbm [resolvable:$true] %s273
          %s275 = sshll.u32 [#allocation4], 4
          %s276 = int_to_ptr.vmem [resolvable:$true] %s275
          %281 = dma.hbm_to_vmem [thread:$0]  %s274, 1536, %s276, [#allocation5], 64, 64, 4
        $region24: #{_lambda_.1} parent=11 // pred_fallthru
          _
        // Predicated region
        $region25: #{_lambda_.1} parent=11 // pred_check
          %p282 = pneg %p153
        $region26: #{_lambda_.1} parent=11 // pred_check_branch
          %284 = sbr.rel (%p282) target = $region28
        $region27: #{_lambda_.1} parent=11 // pred_region
          _
        $region28: #{_lambda_.1} parent=11 // pred_fallthru
          _
        // Predicated region
        $region29: #{_lambda_.1} parent=11 // pred_check
          %p285 = pneg %p174
        $region30: #{_lambda_.1} parent=11 // pred_check_branch
          %287 = sbr.rel (%p285) target = $region32
        $region31: #{_lambda_.1} parent=11 // pred_region
          _
        $region32: #{_lambda_.1} parent=11 // pred_fallthru
          _
        // Predicated region
        $region33: #{_lambda_.1} parent=11 // pred_check
          %p288 = pneg %p195
        $region34: #{_lambda_.1} parent=11 // pred_check_branch
          %290 = sbr.rel (%p288) target = $region36
        $region35: #{_lambda_.1} parent=11 // pred_region
          _
        $region36: #{_lambda_.1} parent=11 // pred_fallthru
          _
      $region12: #{_lambda_.1} parent=5 // pred_fallthru
        _
      %p291 = scmp.lt.s32.totalorder %s17, 2
      // Predicated region
      $region37: #{_lambda_.1} parent=5 // pred_check
        %p292 = pneg %p291
      $region38: #{_lambda_.1} parent=5 // pred_check_branch
        %294 = sbr.rel (%p292) target = $region40
      $region39: #{_lambda_.1} parent=5 // pred_region
        // Predicated region
        $region41: #{_lambda_.1} parent=39 // pred_check
          %p295 = pneg %p37
        $region42: #{_lambda_.1} parent=39 // pred_check_branch
          %297 = sbr.rel (%p295) target = $region44
        $region43: #{_lambda_.1} parent=39 // pred_region
          %p298 = scmp.lt.s32.totalorder %s17, 1
          %s299 = scalar_select %p298, %s17, 1
          %s300 = smul.addr %s299, 4
          %s301 = scalar_lea.vmem %s0, %s300
        $region44: #{_lambda_.1} parent=39 // pred_fallthru
          _
        // Predicated region
        $region45: #{_lambda_.1} parent=39 // pred_check
          %p302 = pneg %p63
        $region46: #{_lambda_.1} parent=39 // pred_check_branch
          %304 = sbr.rel (%p302) target = $region48
        $region47: #{_lambda_.1} parent=39 // pred_region
          %p305 = scmp.lt.s32.totalorder %s17, 1
          %s306 = scalar_select %p305, %s17, 1
          %s307 = smul.addr %s306, 2
          %s308 = smul.addr %s307, 4
          %s309 = scalar_lea.vmem %s1, %s308
        $region48: #{_lambda_.1} parent=39 // pred_fallthru
          _
      $region40: #{_lambda_.1} parent=5 // pred_fallthru
        _
      %p310 = scmp.le.s32.totalorder 1, %s17
      %p311 = scmp.lt.s32.totalorder %s17, 3
      %p312 = pnand %p310, %p311
      %p313 = pneg %p312
      // Predicated region
      $region49: #{_lambda_.1} parent=5 // pred_check
        _
      $region50: #{_lambda_.1} parent=5 // pred_check_branch
        %315 = sbr.rel (%p312) target = $region52
      $region51: #{_lambda_.1} parent=5 // pred_region
        %s316 = ssub.s32 %s17, 1
        // Predicated region
        $region53: #{_lambda_.1} parent=51 // pred_check
          %p317 = pneg %p132
        $region54: #{_lambda_.1} parent=51 // pred_check_branch
          %319 = sbr.rel (%p317) target = $region56
        $region55: #{_lambda_.1} parent=51 // pred_region
          %321 = dma.done [#allocation5], 1536
        $region56: #{_lambda_.1} parent=51 // pred_fallthru
          _
        %p322 = scmp.lt.s32.totalorder %s22, 1
        %s323 = scalar_select %p322, %s22, 1
        %s324 = smul.addr %s323, 4
        %s325 = scalar_lea.vmem %s0, %s324
        %p326 = pneg %p43
        %p327 = pneg %p40
        %p328 = scmp.lt.s32.totalorder %s22, 1
        %s329 = scalar_select %p328, %s22, 1
        %s330 = smul.addr %s329, 2
        %s331 = smul.addr %s330, 4
        %s332 = scalar_lea.vmem %s1, %s331
        %p333 = pneg %p69
        %p334 = pneg %p66
        %p335 = pneg %p90
        %p336 = pneg %p87
        %p337 = pneg %p111
        %p338 = pneg %p108
        %p339 = pneg %p132
        %p340 = pneg %p129
        %p341 = pneg %p153
        %p342 = pneg %p150
        %p343 = pneg %p174
        %p344 = pneg %p171
        %p345 = pneg %p195
        %p346 = pneg %p192
        %p347 = pneg %p221
        %p348 = pneg %p218
        %p349 = scmp.lt.s32.totalorder %s22, 1
        %s350 = scalar_select %p349, %s22, 1
        %s351 = smul.addr %s350, 8
        %s352 = scalar_lea.vmem %s8, %s351
        %p353 = pneg %p247
        %p354 = pneg %p244
        %p355 = scmp.lt.s32.totalorder %s22, 1
        %s356 = scalar_select %p355, %s22, 1
        %s357 = smul.addr %s356, 2
        %s358 = smul.addr %s357, 8
        %s359 = scalar_lea.vmem %s9, %s358
        %p360 = scmp.lt.s32.totalorder %s22, 1
        %s361 = scalar_select %p360, %s22, 1
        %s362 = smul.addr %s361, 4
        %s363 = scalar_lea.vmem %s0, %s362
        %p364 = scmp.lt.s32.totalorder %s22, 1
        %s365 = scalar_select %p364, %s22, 1
        %s366 = smul.addr %s365, 2
        %s367 = smul.addr %s366, 4
        %s368 = scalar_lea.vmem %s1, %s367
        %p369 = scmp.lt.s32.totalorder %s22, 1
        %s370 = scalar_select %p369, %s22, 1
        %s371 = smul.addr %s370, 8
        %s372 = scalar_lea.vmem %s8, %s371
        %p373 = scmp.lt.s32.totalorder %s22, 1
        %s374 = scalar_select %p373, %s22, 1
        %s375 = smul.addr %s374, 2
        %s376 = smul.addr %s375, 8
        %s377 = scalar_lea.vmem %s9, %s376
        %v379 = vld [vmem:[%s363] sm:$0xf]
        %v380 = vld [vmem:[%s368] sm:$0xf]
        %v381 = vld [vmem:[%s368 + $0x4] sm:$0x1]
        %s382 = scalar_lea.vmem %s2, %s22
        %v383 = vld [vmem:[%s382] sm:$0x1]
        %s384 = scalar_lea.vmem %s3, %s22
        %v385 = vld [vmem:[%s384] sm:$0x1]
        %v386 = vld [vmem:[#allocation4] sm:$0xf]
        %v387 = vld [vmem:[#allocation4 + $0x4] sm:$0xf]
        %v388 = vld [vmem:[#allocation4 + $0x8] sm:$0xf]
        %v389 = vld [vmem:[#allocation4 + $0xc] sm:$0xf]
        %v390 = vld [vmem:[%s5] sm:$0x1]
        %v392 = vperm.slane %v390, 0
        %v398 = vunpack.c.l.b16 %v386
        %v399 = vunpack.c.l.b16 %v387
        %v400 = vunpack.c.l.b16 %v388
        %v401 = vunpack.c.l.b16 %v389
        %v402 = vpack.c.b16 %v399, %v398
        %v403 = vpack.c.b16 %v401, %v400
        %vm406 = vcmask 261120
        %v408 = vsel %vm406, %v379, 0
        %410 = vmatpush.bf16.msra.mxu0 0
        %411 = vmatpush.bf16.msra.mxu0 0
        %412 = vmatpush.bf16.msra.mxu0 0
        %413 = vmatpush.bf16.msra.mxu0 0
        %414 = vmatpush.bf16.msra.mxu0 0
        %415 = vmatpush.bf16.msra.mxu0 0
        %416 = vmatpush.bf16.msra.mxu0 %v403
        %417 = vmatpush.bf16.msra.mxu0 %v402
        %418 = vmatmul.bf16.gmra.mxu0 %v408
        %v419 = vpop.f32.mrf.mxu0
        %v420 = vadd.f32 %v392, %v419
        %v421 = vpop.f32.mrf.mxu0
        %422 = vdwg.mxu0
        %s423 = scalar_lea.vmem [#allocation4], 16
        %v424 = vld [vmem:[%s423] sm:$0xf]
        %v425 = vld [vmem:[%s423 + $0x4] sm:$0xf]
        %v426 = vld [vmem:[%s423 + $0x8] sm:$0xf]
        %v427 = vld [vmem:[%s423 + $0xc] sm:$0xf]
        %s428 = scalar_lea.vmem %s5, 1
        %v429 = vld [vmem:[%s428] sm:$0x1]
        %v431 = vperm.slane %v429, 0
        %v437 = vunpack.c.l.b16 %v424
        %v438 = vunpack.c.l.b16 %v425
        %v439 = vunpack.c.l.b16 %v426
        %v440 = vunpack.c.l.b16 %v427
        %v441 = vpack.c.b16 %v438, %v437
        %v442 = vpack.c.b16 %v440, %v439
        %445 = vmatpush.bf16.msra.mxu0 0
        %446 = vmatpush.bf16.msra.mxu0 0
        %447 = vmatpush.bf16.msra.mxu0 0
        %448 = vmatpush.bf16.msra.mxu0 0
        %449 = vmatpush.bf16.msra.mxu0 0
        %450 = vmatpush.bf16.msra.mxu0 0
        %451 = vmatpush.bf16.msra.mxu0 %v442
        %452 = vmatpush.bf16.msra.mxu0 %v441
        %453 = vmatmul.bf16.gmra.mxu0 %v408
        %v454 = vpop.f32.mrf.mxu0
        %v455 = vadd.f32 %v431, %v454
        %v456 = vpop.f32.mrf.mxu0
        %457 = vdwg.mxu0
        %s458 = scalar_lea.vmem [#allocation4], 32
        %v459 = vld [vmem:[%s458] sm:$0xf]
        %v460 = vld [vmem:[%s458 + $0x4] sm:$0xf]
        %v461 = vld [vmem:[%s458 + $0x8] sm:$0xf]
        %v462 = vld [vmem:[%s458 + $0xc] sm:$0xf]
        %s463 = scalar_lea.vmem %s5, 2
        %v464 = vld [vmem:[%s463] sm:$0x1]
        %v466 = vperm.slane %v464, 0
        %v472 = vunpack.c.l.b16 %v459
        %v473 = vunpack.c.l.b16 %v460
        %v474 = vunpack.c.l.b16 %v461
        %v475 = vunpack.c.l.b16 %v462
        %v476 = vpack.c.b16 %v473, %v472
        %v477 = vpack.c.b16 %v475, %v474
        %480 = vmatpush.bf16.msra.mxu0 0
        %481 = vmatpush.bf16.msra.mxu0 0
        %482 = vmatpush.bf16.msra.mxu0 0
        %483 = vmatpush.bf16.msra.mxu0 0
        %484 = vmatpush.bf16.msra.mxu0 0
        %485 = vmatpush.bf16.msra.mxu0 0
        %486 = vmatpush.bf16.msra.mxu0 %v477
        %487 = vmatpush.bf16.msra.mxu0 %v476
        %488 = vmatmul.bf16.gmra.mxu0 %v408
        %v489 = vpop.f32.mrf.mxu0
        %v490 = vadd.f32 %v466, %v489
        %v491 = vpop.f32.mrf.mxu0
        %492 = vdwg.mxu0
        %s493 = scalar_lea.vmem [#allocation4], 48
        %v494 = vld [vmem:[%s493] sm:$0xf]
        %v495 = vld [vmem:[%s493 + $0x4] sm:$0xf]
        %v496 = vld [vmem:[%s493 + $0x8] sm:$0xf]
        %v497 = vld [vmem:[%s493 + $0xc] sm:$0xf]
        %s498 = scalar_lea.vmem %s5, 3
        %v499 = vld [vmem:[%s498] sm:$0x1]
        %v501 = vperm.slane %v499, 0
        %v505 = vunpack.c.l.b16 %v380
        %v506 = vunpack.c.l.b16 %v381
        %v507 = vpack.c.b16 %v506, %v505
        %v512 = vunpack.c.l.b16 %v494
        %v513 = vunpack.c.l.b16 %v495
        %v514 = vunpack.c.l.b16 %v496
        %v515 = vunpack.c.l.b16 %v497
        %v516 = vpack.c.b16 %v513, %v512
        %v517 = vpack.c.b16 %v515, %v514
        %v521 = vsel %vm406, %v507, 0
        %523 = vmatpush.bf16.msra.mxu0 0
        %524 = vmatpush.bf16.msra.mxu0 0
        %525 = vmatpush.bf16.msra.mxu0 0
        %526 = vmatpush.bf16.msra.mxu0 0
        %527 = vmatpush.bf16.msra.mxu0 0
        %528 = vmatpush.bf16.msra.mxu0 0
        %529 = vmatpush.bf16.msra.mxu0 %v517
        %530 = vmatpush.bf16.msra.mxu0 %v516
        %531 = vmatmul.bf16.gmra.mxu0 %v521
        %v532 = vpop.f32.mrf.mxu0
        %v533 = vadd.f32 %v501, %v532
        %v534 = vpop.f32.mrf.mxu0
        %v535 = vadd.f32 %v501, %v534
        %536 = vdwg.mxu0
        %s537 = scalar_lea.vmem [#allocation4], 64
        %v538 = vld [vmem:[%s537] sm:$0xf]
        %v539 = vld [vmem:[%s537 + $0x4] sm:$0xf]
        %v540 = vld [vmem:[%s537 + $0x8] sm:$0xf]
        %v541 = vld [vmem:[%s537 + $0xc] sm:$0xf]
        %s542 = scalar_lea.vmem %s5, 4
        %v543 = vld [vmem:[%s542] sm:$0x1]
        %v545 = vperm.slane %v543, 0
        %v551 = vunpack.c.l.b16 %v538
        %v552 = vunpack.c.l.b16 %v539
        %v553 = vunpack.c.l.b16 %v540
        %v554 = vunpack.c.l.b16 %v541
        %v555 = vpack.c.b16 %v552, %v551
        %v556 = vpack.c.b16 %v554, %v553
        %559 = vmatpush.bf16.msra.mxu0 0
        %560 = vmatpush.bf16.msra.mxu0 0
        %561 = vmatpush.bf16.msra.mxu0 0
        %562 = vmatpush.bf16.msra.mxu0 0
        %563 = vmatpush.bf16.msra.mxu0 0
        %564 = vmatpush.bf16.msra.mxu0 0
        %565 = vmatpush.bf16.msra.mxu0 %v556
        %566 = vmatpush.bf16.msra.mxu0 %v555
        %567 = vmatmul.bf16.gmra.mxu0 %v521
        %v568 = vpop.f32.mrf.mxu0
        %v569 = vadd.f32 %v545, %v568
        %v570 = vpop.f32.mrf.mxu0
        %v571 = vadd.f32 %v545, %v570
        %572 = vdwg.mxu0
        %s573 = scalar_lea.vmem [#allocation4], 80
        %v574 = vld [vmem:[%s573] sm:$0xf]
        %v575 = vld [vmem:[%s573 + $0x4] sm:$0xf]
        %v576 = vld [vmem:[%s573 + $0x8] sm:$0xf]
        %v577 = vld [vmem:[%s573 + $0xc] sm:$0xf]
        %s578 = scalar_lea.vmem %s5, 5
        %v579 = vld [vmem:[%s578] sm:$0x1]
        %v581 = vperm.slane %v579, 0
        %v587 = vunpack.c.l.b16 %v574
        %v588 = vunpack.c.l.b16 %v575
        %v589 = vunpack.c.l.b16 %v576
        %v590 = vunpack.c.l.b16 %v577
        %v591 = vpack.c.b16 %v588, %v587
        %v592 = vpack.c.b16 %v590, %v589
        %595 = vmatpush.bf16.msra.mxu0 0
        %596 = vmatpush.bf16.msra.mxu0 0
        %597 = vmatpush.bf16.msra.mxu0 0
        %598 = vmatpush.bf16.msra.mxu0 0
        %599 = vmatpush.bf16.msra.mxu0 0
        %600 = vmatpush.bf16.msra.mxu0 0
        %601 = vmatpush.bf16.msra.mxu0 %v592
        %602 = vmatpush.bf16.msra.mxu0 %v591
        %603 = vmatmul.bf16.gmra.mxu0 %v521
        %v604 = vpop.f32.mrf.mxu0
        %v605 = vadd.f32 %v581, %v604
        %v606 = vpop.f32.mrf.mxu0
        %v607 = vadd.f32 %v581, %v606
        %608 = vdwg.mxu0
        %v609 = vpack.c.bf16 %v420, %v420
        %v610 = vpack.c.bf16 %v571, %v569
        %v611 = vpack.c.bf16 %v607, %v605
        %v612 = vperm.slane %v385, 0
        %vm613 = vcmask 64512
        %v615 = vsel %vm613, %v609, 0
        %v618 = vsel %vm613, %v610, 0
        %620 = vmatpush.bf16.xpose.msra.mxu0 0
        %621 = vmatpush.bf16.xpose.msra.mxu0 0
        %622 = vmatpush.bf16.xpose.msra.mxu0 0
        %623 = vmatpush.bf16.xpose.msra.mxu0 0
        %624 = vmatpush.bf16.xpose.msra.mxu0 0
        %625 = vmatpush.bf16.xpose.msra.mxu0 0
        %626 = vmatpush.bf16.xpose.msra.mxu0 0
        %627 = vmatpush.bf16.xpose.msra.mxu0 %v618
        %628 = vmatmul.bf16.gmra.mxu0 %v615
        %v629 = vpop.f32.mrf.mxu0
        %v630 = vadd.f32 %v612, %v629
        %v631 = vpop.f32.mrf.mxu0
        %632 = vdwg.mxu0
        %vm633 = vcmask 80896
        %v634 = vsel %vm633, %v630, -inf
        %635 = vmax.xlane.f32.xlu0 %v634
        %v636 = vpop.xlane.xlu0 %635
        %v637 = vsub.f32 %v630, %v636
        %v638 = vmul.f32 %v637, 1.442695
        %v639 = vpow.pop %v638
        %v640 = vsel %vm633, %v639, 0.0
        %641 = vadd.xlane.f32.xlu0 %v640
        %v642 = vpop.xlane.xlu0 %641
        %v643 = vrcp.pop %v642
        %v644 = vmul.f32 %v639, %v643
        %v645 = vpack.c.bf16 %v644, %v644
        %v647 = vsel %vm633, %v645, 0
        %vm649 = vcmask 1044480
        %v651 = vsel %vm649, %v611, 0
        %653 = vmatpush.bf16.msra.mxu0 0
        %654 = vmatpush.bf16.msra.mxu0 0
        %655 = vmatpush.bf16.msra.mxu0 0
        %656 = vmatpush.bf16.msra.mxu0 0
        %657 = vmatpush.bf16.msra.mxu0 0
        %658 = vmatpush.bf16.msra.mxu0 0
        %659 = vmatpush.bf16.msra.mxu0 0
        %660 = vmatpush.bf16.msra.mxu0 %v651
        %661 = vmatmul.bf16.gmra.mxu0 %v647
        %v662 = vpop.f32.mrf.mxu0
        %v663 = vadd.f32 0.0, %v662
        %v664 = vpop.f32.mrf.mxu0
        %665 = vdwg.mxu0
        %666 = vst.msk [vmem:[#allocation2] sm:$0xff] %vm613, %v663
        %668 = vrot.lane.b32.xlu0 %v609, 120
        %v669 = vpop.permute.xlu0 %668
        %671 = vrot.lane.b32.xlu0 %v610, 120
        %v672 = vpop.permute.xlu0 %671
        %v674 = vsel %vm613, %v669, 0
        %v677 = vsel %vm613, %v672, 0
        %679 = vmatpush.bf16.xpose.msra.mxu0 0
        %680 = vmatpush.bf16.xpose.msra.mxu0 0
        %681 = vmatpush.bf16.xpose.msra.mxu0 0
        %682 = vmatpush.bf16.xpose.msra.mxu0 0
        %683 = vmatpush.bf16.xpose.msra.mxu0 0
        %684 = vmatpush.bf16.xpose.msra.mxu0 0
        %685 = vmatpush.bf16.xpose.msra.mxu0 0
        %686 = vmatpush.bf16.xpose.msra.mxu0 %v677
        %687 = vmatmul.bf16.gmra.mxu0 %v674
        %v688 = vpop.f32.mrf.mxu0
        %v689 = vadd.f32 %v612, %v688
        %v690 = vpop.f32.mrf.mxu0
        %691 = vdwg.mxu0
        %v692 = vsel %vm633, %v689, -inf
        %693 = vmax.xlane.f32.xlu0 %v692
        %v694 = vpop.xlane.xlu0 %693
        %v695 = vsub.f32 %v689, %v694
        %v696 = vmul.f32 %v695, 1.442695
        %v697 = vpow.pop %v696
        %v698 = vsel %vm633, %v697, 0.0
        %699 = vadd.xlane.f32.xlu0 %v698
        %v700 = vpop.xlane.xlu0 %699
        %v701 = vrcp.pop %v700
        %v702 = vmul.f32 %v697, %v701
        %v703 = vpack.c.bf16 %v702, %v702
        %705 = vrot.lane.b32.xlu0 %v611, 120
        %v706 = vpop.permute.xlu0 %705
        %v708 = vsel %vm633, %v703, 0
        %v711 = vsel %vm649, %v706, 0
        %713 = vmatpush.bf16.msra.mxu0 0
        %714 = vmatpush.bf16.msra.mxu0 0
        %715 = vmatpush.bf16.msra.mxu0 0
        %716 = vmatpush.bf16.msra.mxu0 0
        %717 = vmatpush.bf16.msra.mxu0 0
        %718 = vmatpush.bf16.msra.mxu0 0
        %719 = vmatpush.bf16.msra.mxu0 0
        %720 = vmatpush.bf16.msra.mxu0 %v711
        %721 = vmatmul.bf16.gmra.mxu0 %v708
        %v722 = vpop.f32.mrf.mxu0
        %v723 = vadd.f32 0.0, %v722
        %v724 = vpop.f32.mrf.mxu0
        %725 = vdwg.mxu0
        %727 = vrot.lane.b32.xlu0 %v723, 8
        %v728 = vpop.permute.xlu0 %727
        %vm730 = vcmask 130112
        %731 = vst.msk [vmem:[#allocation2] sm:$0xff] %vm730, %v728
        %732 = vrot.lane.b32.xlu0 %v609, 112
        %v733 = vpop.permute.xlu0 %732
        %734 = vrot.lane.b32.xlu0 %v610, 112
        %v735 = vpop.permute.xlu0 %734
        %v737 = vsel %vm613, %v733, 0
        %v740 = vsel %vm613, %v735, 0
        %742 = vmatpush.bf16.xpose.msra.mxu0 0
        %743 = vmatpush.bf16.xpose.msra.mxu0 0
        %744 = vmatpush.bf16.xpose.msra.mxu0 0
        %745 = vmatpush.bf16.xpose.msra.mxu0 0
        %746 = vmatpush.bf16.xpose.msra.mxu0 0
        %747 = vmatpush.bf16.xpose.msra.mxu0 0
        %748 = vmatpush.bf16.xpose.msra.mxu0 0
        %749 = vmatpush.bf16.xpose.msra.mxu0 %v740
        %750 = vmatmul.bf16.gmra.mxu0 %v737
        %v751 = vpop.f32.mrf.mxu0
        %v752 = vadd.f32 %v612, %v751
        %v753 = vpop.f32.mrf.mxu0
        %754 = vdwg.mxu0
        %v755 = vsel %vm633, %v752, -inf
        %756 = vmax.xlane.f32.xlu0 %v755
        %v757 = vpop.xlane.xlu0 %756
        %v758 = vsub.f32 %v752, %v757
        %v759 = vmul.f32 %v758, 1.442695
        %v760 = vpow.pop %v759
        %v761 = vsel %vm633, %v760, 0.0
        %762 = vadd.xlane.f32.xlu0 %v761
        %v763 = vpop.xlane.xlu0 %762
        %v764 = vrcp.pop %v763
        %v765 = vmul.f32 %v760, %v764
        %v766 = vpack.c.bf16 %v765, %v765
        %767 = vrot.lane.b32.xlu0 %v611, 112
        %v768 = vpop.permute.xlu0 %767
        %v770 = vsel %vm633, %v766, 0
        %v773 = vsel %vm649, %v768, 0
        %775 = vmatpush.bf16.msra.mxu0 0
        %776 = vmatpush.bf16.msra.mxu0 0
        %777 = vmatpush.bf16.msra.mxu0 0
        %778 = vmatpush.bf16.msra.mxu0 0
        %779 = vmatpush.bf16.msra.mxu0 0
        %780 = vmatpush.bf16.msra.mxu0 0
        %781 = vmatpush.bf16.msra.mxu0 0
        %782 = vmatpush.bf16.msra.mxu0 %v773
        %783 = vmatmul.bf16.gmra.mxu0 %v770
        %v784 = vpop.f32.mrf.mxu0
        %v785 = vadd.f32 0.0, %v784
        %v786 = vpop.f32.mrf.mxu0
        %787 = vdwg.mxu0
        %789 = vrot.lane.b32.xlu0 %v785, 16
        %v790 = vpop.permute.xlu0 %789
        %vm792 = vcmask 195712
        %793 = vst.msk [vmem:[#allocation2] sm:$0xff] %vm792, %v790
        %794 = vrot.lane.b32.xlu0 %v609, 104
        %v795 = vpop.permute.xlu0 %794
        %796 = vrot.lane.b32.xlu0 %v610, 104
        %v797 = vpop.permute.xlu0 %796
        %v799 = vsel %vm613, %v795, 0
        %v802 = vsel %vm613, %v797, 0
        %804 = vmatpush.bf16.xpose.msra.mxu0 0
        %805 = vmatpush.bf16.xpose.msra.mxu0 0
        %806 = vmatpush.bf16.xpose.msra.mxu0 0
        %807 = vmatpush.bf16.xpose.msra.mxu0 0
        %808 = vmatpush.bf16.xpose.msra.mxu0 0
        %809 = vmatpush.bf16.xpose.msra.mxu0 0
        %810 = vmatpush.bf16.xpose.msra.mxu0 0
        %811 = vmatpush.bf16.xpose.msra.mxu0 %v802
        %812 = vmatmul.bf16.gmra.mxu0 %v799
        %v813 = vpop.f32.mrf.mxu0
        %v814 = vadd.f32 %v612, %v813
        %v815 = vpop.f32.mrf.mxu0
        %816 = vdwg.mxu0
        %v817 = vsel %vm633, %v814, -inf
        %818 = vmax.xlane.f32.xlu0 %v817
        %v819 = vpop.xlane.xlu0 %818
        %v820 = vsub.f32 %v814, %v819
        %v821 = vmul.f32 %v820, 1.442695
        %v822 = vpow.pop %v821
        %v823 = vsel %vm633, %v822, 0.0
        %824 = vadd.xlane.f32.xlu0 %v823
        %v825 = vpop.xlane.xlu0 %824
        %v826 = vrcp.pop %v825
        %v827 = vmul.f32 %v822, %v826
        %v828 = vpack.c.bf16 %v827, %v827
        %829 = vrot.lane.b32.xlu0 %v611, 104
        %v830 = vpop.permute.xlu0 %829
        %v832 = vsel %vm633, %v828, 0
        %v835 = vsel %vm649, %v830, 0
        %837 = vmatpush.bf16.msra.mxu0 0
        %838 = vmatpush.bf16.msra.mxu0 0
        %839 = vmatpush.bf16.msra.mxu0 0
        %840 = vmatpush.bf16.msra.mxu0 0
        %841 = vmatpush.bf16.msra.mxu0 0
        %842 = vmatpush.bf16.msra.mxu0 0
        %843 = vmatpush.bf16.msra.mxu0 0
        %844 = vmatpush.bf16.msra.mxu0 %v835
        %845 = vmatmul.bf16.gmra.mxu0 %v832
        %v846 = vpop.f32.mrf.mxu0
        %v847 = vadd.f32 0.0, %v846
        %v848 = vpop.f32.mrf.mxu0
        %849 = vdwg.mxu0
        %851 = vrot.lane.b32.xlu0 %v847, 24
        %v852 = vpop.permute.xlu0 %851
        %vm854 = vcmask 261312
        %855 = vst.msk [vmem:[#allocation2] sm:$0xff] %vm854, %v852
        %v856 = vld [vmem:[#allocation2] sm:$0xff]
        %v857 = vpack.c.bf16 %v856, %v856
        %v858 = vld [vmem:[%s6] sm:$0xf]
        %v859 = vld [vmem:[%s6 + $0x4] sm:$0xf]
        %v860 = vld [vmem:[%s6 + $0x8] sm:$0xf]
        %v861 = vld [vmem:[%s6 + $0xc] sm:$0xf]
        %v862 = vld [vmem:[%s7] sm:$0x1]
        %v864 = vperm.slane %v862, 0
        %v870 = vunpack.c.l.b16 %v858
        %v871 = vunpack.c.l.b16 %v859
        %v872 = vunpack.c.l.b16 %v860
        %v873 = vunpack.c.l.b16 %v861
        %v874 = vpack.c.b16 %v871, %v870
        %v875 = vpack.c.b16 %v873, %v872
        %v879 = vsel %vm406, %v857, 0
        %881 = vmatpush.bf16.msra.mxu0 0
        %882 = vmatpush.bf16.msra.mxu0 0
        %883 = vmatpush.bf16.msra.mxu0 0
        %884 = vmatpush.bf16.msra.mxu0 0
        %885 = vmatpush.bf16.msra.mxu0 0
        %886 = vmatpush.bf16.msra.mxu0 0
        %887 = vmatpush.bf16.msra.mxu0 %v875
        %888 = vmatpush.bf16.msra.mxu0 %v874
        %889 = vmatmul.bf16.gmra.mxu0 %v879
        %v890 = vpop.f32.mrf.mxu0
        %v891 = vadd.f32 %v864, %v890
        %v892 = vpop.f32.mrf.mxu0
        %893 = vdwg.mxu0
        %894 = vst.msk [vmem:[%s372] sm:$0xff] %vm406, %v891
        %v895 = vpack.c.bf16 %v535, %v533
        %v896 = vpack.c.bf16 %v455, %v455
        %v897 = vpack.c.bf16 %v490, %v490
        %v898 = vperm.slane %v383, 0
        %v900 = vsel %vm613, %v895, 0
        %v903 = vsel %vm613, %v896, 0
        %905 = vmatpush.bf16.xpose.msra.mxu0 0
        %906 = vmatpush.bf16.xpose.msra.mxu0 0
        %907 = vmatpush.bf16.xpose.msra.mxu0 0
        %908 = vmatpush.bf16.xpose.msra.mxu0 0
        %909 = vmatpush.bf16.xpose.msra.mxu0 0
        %910 = vmatpush.bf16.xpose.msra.mxu0 0
        %911 = vmatpush.bf16.xpose.msra.mxu0 0
        %912 = vmatpush.bf16.xpose.msra.mxu0 %v903
        %913 = vmatmul.bf16.gmra.mxu0 %v900
        %v914 = vpop.f32.mrf.mxu0
        %v915 = vadd.f32 %v898, %v914
        %v916 = vpop.f32.mrf.mxu0
        %v917 = vadd.f32 %v898, %v916
        %918 = vdwg.mxu0
        %v919 = vsel %vm613, %v915, -inf
        %920 = vmax.xlane.f32.xlu0 %v919
        %v921 = vpop.xlane.xlu0 %920
        %vm922 = vcmask 58368
        %v923 = vsel %vm922, %v917, -inf
        %924 = vmax.xlane.f32.xlu0 %v923
        %v925 = vpop.xlane.xlu0 %924
        %v926 = vsub.f32 %v915, %v921
        %v927 = vsub.f32 %v917, %v925
        %v928 = vmul.f32 %v926, 1.442695
        %v929 = vpow.pop %v928
        %v930 = vmul.f32 %v927, 1.442695
        %v931 = vpow.pop %v930
        %v932 = vsel %vm613, %v929, 0.0
        %933 = vadd.xlane.f32.xlu0 %v932
        %v934 = vpop.xlane.xlu0 %933
        %v935 = vsel %vm922, %v931, 0.0
        %936 = vadd.xlane.f32.xlu0 %v935
        %v937 = vpop.xlane.xlu0 %936
        %v938 = vrcp.pop %v934
        %v939 = vrcp.pop %v937
        %v940 = vmul.f32 %v929, %v938
        %v941 = vmul.f32 %v931, %v939
        %v942 = vpack.c.bf16 %v941, %v940
        %v944 = vsel %vm613, %v942, 0
        %vm946 = vcmask 1043456
        %v948 = vsel %vm946, %v897, 0
        %950 = vmatpush.bf16.msra.mxu0 0
        %951 = vmatpush.bf16.msra.mxu0 0
        %952 = vmatpush.bf16.msra.mxu0 0
        %953 = vmatpush.bf16.msra.mxu0 0
        %954 = vmatpush.bf16.msra.mxu0 0
        %955 = vmatpush.bf16.msra.mxu0 0
        %956 = vmatpush.bf16.msra.mxu0 0
        %957 = vmatpush.bf16.msra.mxu0 %v948
        %958 = vmatmul.bf16.gmra.mxu0 %v944
        %v959 = vpop.f32.mrf.mxu0
        %v960 = vadd.f32 0.0, %v959
        %v961 = vpop.f32.mrf.mxu0
        %v962 = vadd.f32 0.0, %v961
        %963 = vdwg.mxu0
        %964 = vst.msk [vmem:[#allocation3] sm:$0xff] %vm613, %v960
        %965 = vst.msk [vmem:[#allocation3 + $0x8] sm:$0x3] %vm922, %v962
        %967 = vrot.lane.b32.xlu0 %v895, 120
        %v968 = vpop.permute.xlu0 %967
        %970 = vrot.lane.b32.xlu0 %v896, 120
        %v971 = vpop.permute.xlu0 %970
        %v973 = vsel %vm613, %v968, 0
        %v976 = vsel %vm613, %v971, 0
        %978 = vmatpush.bf16.xpose.msra.mxu0 0
        %979 = vmatpush.bf16.xpose.msra.mxu0 0
        %980 = vmatpush.bf16.xpose.msra.mxu0 0
        %981 = vmatpush.bf16.xpose.msra.mxu0 0
        %982 = vmatpush.bf16.xpose.msra.mxu0 0
        %983 = vmatpush.bf16.xpose.msra.mxu0 0
        %984 = vmatpush.bf16.xpose.msra.mxu0 0
        %985 = vmatpush.bf16.xpose.msra.mxu0 %v976
        %986 = vmatmul.bf16.gmra.mxu0 %v973
        %v987 = vpop.f32.mrf.mxu0
        %v988 = vadd.f32 %v898, %v987
        %v989 = vpop.f32.mrf.mxu0
        %v990 = vadd.f32 %v898, %v989
        %991 = vdwg.mxu0
        %v992 = vsel %vm613, %v988, -inf
        %993 = vmax.xlane.f32.xlu0 %v992
        %v994 = vpop.xlane.xlu0 %993
        %v995 = vsel %vm922, %v990, -inf
        %996 = vmax.xlane.f32.xlu0 %v995
        %v997 = vpop.xlane.xlu0 %996
        %v998 = vsub.f32 %v988, %v994
        %v999 = vsub.f32 %v990, %v997
        %v1000 = vmul.f32 %v998, 1.442695
        %v1001 = vpow.pop %v1000
        %v1002 = vmul.f32 %v999, 1.442695
        %v1003 = vpow.pop %v1002
        %v1004 = vsel %vm613, %v1001, 0.0
        %1005 = vadd.xlane.f32.xlu0 %v1004
        %v1006 = vpop.xlane.xlu0 %1005
        %v1007 = vsel %vm922, %v1003, 0.0
        %1008 = vadd.xlane.f32.xlu0 %v1007
        %v1009 = vpop.xlane.xlu0 %1008
        %v1010 = vrcp.pop %v1006
        %v1011 = vrcp.pop %v1009
        %v1012 = vmul.f32 %v1001, %v1010
        %v1013 = vmul.f32 %v1003, %v1011
        %v1014 = vpack.c.bf16 %v1013, %v1012
        %1016 = vrot.lane.b32.xlu0 %v897, 120
        %v1017 = vpop.permute.xlu0 %1016
        %v1019 = vsel %vm613, %v1014, 0
        %v1022 = vsel %vm946, %v1017, 0
        %1024 = vmatpush.bf16.msra.mxu0 0
        %1025 = vmatpush.bf16.msra.mxu0 0
        %1026 = vmatpush.bf16.msra.mxu0 0
        %1027 = vmatpush.bf16.msra.mxu0 0
        %1028 = vmatpush.bf16.msra.mxu0 0
        %1029 = vmatpush.bf16.msra.mxu0 0
        %1030 = vmatpush.bf16.msra.mxu0 0
        %1031 = vmatpush.bf16.msra.mxu0 %v1022
        %1032 = vmatmul.bf16.gmra.mxu0 %v1019
        %v1033 = vpop.f32.mrf.mxu0
        %v1034 = vadd.f32 0.0, %v1033
        %v1035 = vpop.f32.mrf.mxu0
        %v1036 = vadd.f32 0.0, %v1035
        %1037 = vdwg.mxu0
        %1040 = vrot.lane.b32.xlu0 %v1034, 8
        %v1041 = vpop.permute.xlu0 %1040
        %1042 = vrot.lane.b32.xlu0 %v1036, 8
        %v1043 = vpop.permute.xlu0 %1042
        %1046 = vst.msk [vmem:[#allocation3] sm:$0xff] %vm730, %v1041
        %vm1047 = vcmask 123968
        %1048 = vst.msk [vmem:[#allocation3 + $0x8] sm:$0x3] %vm1047, %v1043
        %1049 = vrot.lane.b32.xlu0 %v895, 112
        %v1050 = vpop.permute.xlu0 %1049
        %1051 = vrot.lane.b32.xlu0 %v896, 112
        %v1052 = vpop.permute.xlu0 %1051
        %v1054 = vsel %vm613, %v1050, 0
        %v1057 = vsel %vm613, %v1052, 0
        %1059 = vmatpush.bf16.xpose.msra.mxu0 0
        %1060 = vmatpush.bf16.xpose.msra.mxu0 0
        %1061 = vmatpush.bf16.xpose.msra.mxu0 0
        %1062 = vmatpush.bf16.xpose.msra.mxu0 0
        %1063 = vmatpush.bf16.xpose.msra.mxu0 0
        %1064 = vmatpush.bf16.xpose.msra.mxu0 0
        %1065 = vmatpush.bf16.xpose.msra.mxu0 0
        %1066 = vmatpush.bf16.xpose.msra.mxu0 %v1057
        %1067 = vmatmul.bf16.gmra.mxu0 %v1054
        %v1068 = vpop.f32.mrf.mxu0
        %v1069 = vadd.f32 %v898, %v1068
        %v1070 = vpop.f32.mrf.mxu0
        %v1071 = vadd.f32 %v898, %v1070
        %1072 = vdwg.mxu0
        %v1073 = vsel %vm613, %v1069, -inf
        %1074 = vmax.xlane.f32.xlu0 %v1073
        %v1075 = vpop.xlane.xlu0 %1074
        %v1076 = vsel %vm922, %v1071, -inf
        %1077 = vmax.xlane.f32.xlu0 %v1076
        %v1078 = vpop.xlane.xlu0 %1077
        %v1079 = vsub.f32 %v1069, %v1075
        %v1080 = vsub.f32 %v1071, %v1078
        %v1081 = vmul.f32 %v1079, 1.442695
        %v1082 = vpow.pop %v1081
        %v1083 = vmul.f32 %v1080, 1.442695
        %v1084 = vpow.pop %v1083
        %v1085 = vsel %vm613, %v1082, 0.0
        %1086 = vadd.xlane.f32.xlu0 %v1085
        %v1087 = vpop.xlane.xlu0 %1086
        %v1088 = vsel %vm922, %v1084, 0.0
        %1089 = vadd.xlane.f32.xlu0 %v1088
        %v1090 = vpop.xlane.xlu0 %1089
        %v1091 = vrcp.pop %v1087
        %v1092 = vrcp.pop %v1090
        %v1093 = vmul.f32 %v1082, %v1091
        %v1094 = vmul.f32 %v1084, %v1092
        %v1095 = vpack.c.bf16 %v1094, %v1093
        %1096 = vrot.lane.b32.xlu0 %v897, 112
        %v1097 = vpop.permute.xlu0 %1096
        %v1099 = vsel %vm613, %v1095, 0
        %v1102 = vsel %vm946, %v1097, 0
        %1104 = vmatpush.bf16.msra.mxu0 0
        %1105 = vmatpush.bf16.msra.mxu0 0
        %1106 = vmatpush.bf16.msra.mxu0 0
        %1107 = vmatpush.bf16.msra.mxu0 0
        %1108 = vmatpush.bf16.msra.mxu0 0
        %1109 = vmatpush.bf16.msra.mxu0 0
        %1110 = vmatpush.bf16.msra.mxu0 0
        %1111 = vmatpush.bf16.msra.mxu0 %v1102
        %1112 = vmatmul.bf16.gmra.mxu0 %v1099
        %v1113 = vpop.f32.mrf.mxu0
        %v1114 = vadd.f32 0.0, %v1113
        %v1115 = vpop.f32.mrf.mxu0
        %v1116 = vadd.f32 0.0, %v1115
        %1117 = vdwg.mxu0
        %1120 = vrot.lane.b32.xlu0 %v1114, 16
        %v1121 = vpop.permute.xlu0 %1120
        %1122 = vrot.lane.b32.xlu0 %v1116, 16
        %v1123 = vpop.permute.xlu0 %1122
        %1126 = vst.msk [vmem:[#allocation3] sm:$0xff] %vm792, %v1121
        %vm1127 = vcmask 189568
        %1128 = vst.msk [vmem:[#allocation3 + $0x8] sm:$0x3] %vm1127, %v1123
        %1129 = vrot.lane.b32.xlu0 %v895, 104
        %v1130 = vpop.permute.xlu0 %1129
        %1131 = vrot.lane.b32.xlu0 %v896, 104
        %v1132 = vpop.permute.xlu0 %1131
        %v1134 = vsel %vm613, %v1130, 0
        %v1137 = vsel %vm613, %v1132, 0
        %1139 = vmatpush.bf16.xpose.msra.mxu0 0
        %1140 = vmatpush.bf16.xpose.msra.mxu0 0
        %1141 = vmatpush.bf16.xpose.msra.mxu0 0
        %1142 = vmatpush.bf16.xpose.msra.mxu0 0
        %1143 = vmatpush.bf16.xpose.msra.mxu0 0
        %1144 = vmatpush.bf16.xpose.msra.mxu0 0
        %1145 = vmatpush.bf16.xpose.msra.mxu0 0
        %1146 = vmatpush.bf16.xpose.msra.mxu0 %v1137
        %1147 = vmatmul.bf16.gmra.mxu0 %v1134
        %v1148 = vpop.f32.mrf.mxu0
        %v1149 = vadd.f32 %v898, %v1148
        %v1150 = vpop.f32.mrf.mxu0
        %v1151 = vadd.f32 %v898, %v1150
        %1152 = vdwg.mxu0
        %v1153 = vsel %vm613, %v1149, -inf
        %1154 = vmax.xlane.f32.xlu0 %v1153
        %v1155 = vpop.xlane.xlu0 %1154
        %v1156 = vsel %vm922, %v1151, -inf
        %1157 = vmax.xlane.f32.xlu0 %v1156
        %v1158 = vpop.xlane.xlu0 %1157
        %v1159 = vsub.f32 %v1149, %v1155
        %v1160 = vsub.f32 %v1151, %v1158
        %v1161 = vmul.f32 %v1159, 1.442695
        %v1162 = vpow.pop %v1161
        %v1163 = vmul.f32 %v1160, 1.442695
        %v1164 = vpow.pop %v1163
        %v1165 = vsel %vm613, %v1162, 0.0
        %1166 = vadd.xlane.f32.xlu0 %v1165
        %v1167 = vpop.xlane.xlu0 %1166
        %v1168 = vsel %vm922, %v1164, 0.0
        %1169 = vadd.xlane.f32.xlu0 %v1168
        %v1170 = vpop.xlane.xlu0 %1169
        %v1171 = vrcp.pop %v1167
        %v1172 = vrcp.pop %v1170
        %v1173 = vmul.f32 %v1162, %v1171
        %v1174 = vmul.f32 %v1164, %v1172
        %v1175 = vpack.c.bf16 %v1174, %v1173
        %1176 = vrot.lane.b32.xlu0 %v897, 104
        %v1177 = vpop.permute.xlu0 %1176
        %v1179 = vsel %vm613, %v1175, 0
        %v1182 = vsel %vm946, %v1177, 0
        %1184 = vmatpush.bf16.msra.mxu0 0
        %1185 = vmatpush.bf16.msra.mxu0 0
        %1186 = vmatpush.bf16.msra.mxu0 0
        %1187 = vmatpush.bf16.msra.mxu0 0
        %1188 = vmatpush.bf16.msra.mxu0 0
        %1189 = vmatpush.bf16.msra.mxu0 0
        %1190 = vmatpush.bf16.msra.mxu0 0
        %1191 = vmatpush.bf16.msra.mxu0 %v1182
        %1192 = vmatmul.bf16.gmra.mxu0 %v1179
        %v1193 = vpop.f32.mrf.mxu0
        %v1194 = vadd.f32 0.0, %v1193
        %v1195 = vpop.f32.mrf.mxu0
        %v1196 = vadd.f32 0.0, %v1195
        %1197 = vdwg.mxu0
        %1200 = vrot.lane.b32.xlu0 %v1194, 24
        %v1201 = vpop.permute.xlu0 %1200
        %1202 = vrot.lane.b32.xlu0 %v1196, 24
        %v1203 = vpop.permute.xlu0 %1202
        %1206 = vst.msk [vmem:[#allocation3] sm:$0xff] %vm854, %v1201
        %vm1207 = vcmask 255168
        %1208 = vst.msk [vmem:[#allocation3 + $0x8] sm:$0x3] %vm1207, %v1203
        %v1209 = vld [vmem:[#allocation3] sm:$0xff]
        %v1210 = vld [vmem:[#allocation3 + $0x8] sm:$0x3]
        %v1211 = vpack.c.bf16 %v1210, %v1209
        %s1212 = scalar_lea.vmem %s6, 16
        %v1213 = vld [vmem:[%s1212] sm:$0xf]
        %v1214 = vld [vmem:[%s1212 + $0x4] sm:$0xf]
        %v1215 = vld [vmem:[%s1212 + $0x8] sm:$0xf]
        %v1216 = vld [vmem:[%s1212 + $0xc] sm:$0xf]
        %s1217 = scalar_lea.vmem %s7, 1
        %v1218 = vld [vmem:[%s1217] sm:$0x1]
        %v1220 = vperm.slane %v1218, 0
        %v1226 = vunpack.c.l.b16 %v1213
        %v1227 = vunpack.c.l.b16 %v1214
        %v1228 = vunpack.c.l.b16 %v1215
        %v1229 = vunpack.c.l.b16 %v1216
        %v1230 = vpack.c.b16 %v1227, %v1226
        %v1231 = vpack.c.b16 %v1229, %v1228
        %v1235 = vsel %vm406, %v1211, 0
        %1237 = vmatpush.bf16.msra.mxu0 0
        %1238 = vmatpush.bf16.msra.mxu0 0
        %1239 = vmatpush.bf16.msra.mxu0 0
        %1240 = vmatpush.bf16.msra.mxu0 0
        %1241 = vmatpush.bf16.msra.mxu0 0
        %1242 = vmatpush.bf16.msra.mxu0 0
        %1243 = vmatpush.bf16.msra.mxu0 %v1231
        %1244 = vmatpush.bf16.msra.mxu0 %v1230
        %1245 = vmatmul.bf16.gmra.mxu0 %v1235
        %v1246 = vpop.f32.mrf.mxu0
        %v1247 = vadd.f32 %v1220, %v1246
        %v1248 = vpop.f32.mrf.mxu0
        %v1249 = vadd.f32 %v1220, %v1248
        %1250 = vdwg.mxu0
        %1251 = vst.msk [vmem:[%s377] sm:$0xff] %vm406, %v1247
        %vm1252 = vcmask 254976
        %1253 = vst.msk [vmem:[%s377 + $0x8] sm:$0x3] %vm1252, %v1249
        %p1254 = scmp.lt.s32.totalorder %s22, 1
        %s1255 = scalar_select %p1254, %s22, 1
        %s1256 = smul.addr %s1255, 8
        %s1257 = scalar_lea.vmem %s8, %s1256
        %p1258 = scmp.lt.s32.totalorder %s22, 1
        %s1259 = scalar_select %p1258, %s22, 1
        %s1260 = smul.addr %s1259, 2
        %s1261 = smul.addr %s1260, 8
        %s1262 = scalar_lea.vmem %s9, %s1261
        // Predicated region
        $region57: #{_lambda_.1} parent=51 // pred_check
          %p1263 = pneg %p218
        $region58: #{_lambda_.1} parent=51 // pred_check_branch
          %1265 = sbr.rel (%p1263) target = $region60
        $region59: #{_lambda_.1} parent=51 // pred_region
          _
        $region60: #{_lambda_.1} parent=51 // pred_fallthru
          _
        // Predicated region
        $region61: #{_lambda_.1} parent=51 // pred_check
          %p1266 = pneg %p244
        $region62: #{_lambda_.1} parent=51 // pred_check_branch
          %1268 = sbr.rel (%p1266) target = $region64
        $region63: #{_lambda_.1} parent=51 // pred_region
          _
        $region64: #{_lambda_.1} parent=51 // pred_fallthru
          _
      $region52: #{_lambda_.1} parent=5 // pred_fallthru
        _
      %p1269 = scmp.le.s32.totalorder 2, %s17
      // Predicated region
      $region65: #{_lambda_.1} parent=5 // pred_check
        %p1270 = pneg %p1269
      $region66: #{_lambda_.1} parent=5 // pred_check_branch
        %1272 = sbr.rel (%p1270) target = $region68
      $region67: #{_lambda_.1} parent=5 // pred_region
        %s1273 = ssub.s32 %s17, 2
        // Predicated region
        $region69: #{_lambda_.1} parent=67 // pred_check
          %p1274 = pneg %p224
        $region70: #{_lambda_.1} parent=67 // pred_check_branch
          %1276 = sbr.rel (%p1274) target = $region72
        $region71: #{_lambda_.1} parent=67 // pred_region
          %p1277 = scmp.lt.s32.totalorder %s23, 1
          %s1278 = scalar_select %p1277, %s23, 1
          %s1279 = smul.addr %s1278, 8
          %s1280 = scalar_lea.vmem %s8, %s1279
        $region72: #{_lambda_.1} parent=67 // pred_fallthru
          _
        // Predicated region
        $region73: #{_lambda_.1} parent=67 // pred_check
          %p1281 = pneg %p250
        $region74: #{_lambda_.1} parent=67 // pred_check_branch
          %1283 = sbr.rel (%p1281) target = $region76
        $region75: #{_lambda_.1} parent=67 // pred_region
          %p1284 = scmp.lt.s32.totalorder %s23, 1
          %s1285 = scalar_select %p1284, %s23, 1
          %s1286 = smul.addr %s1285, 2
          %s1287 = smul.addr %s1286, 8
          %s1288 = scalar_lea.vmem %s9, %s1287
        $region76: #{_lambda_.1} parent=67 // pred_fallthru
          _
      $region68: #{_lambda_.1} parent=5 // pred_fallthru
        _
    $region6: #{_lambda_.1} parent=1 // loop_footer
      %s21 = sadd.s32 1, %s17
    $region7: #{_lambda_.1} parent=1 // loop_footer_branch
      %16 = sbr.rel target = $region3
    $region8: #{_lambda_.1} parent=1 // loop_exit
      _
    %1289 = vsyncpa [#allocation5], 1
    %s1290 = scalar_lea.sflag [#allocation5], 1
    %1291 = vsyncpa %s1290, 1

</llo_original>
